<compile_context>
chip_gen: v6e
topology: v6e:2x2x1
jax: 0.10.0
libtpu: 0.0.40
codegen_flags: <defaults>
</compile_context>

<pallas_src>
import functools

import jax
import jax.numpy as jnp
import numpy as np
from jax.experimental import pallas as pl
from jax.experimental.pallas import tpu as pltpu


def _fn(a, b):
    """|<a, b>| per batch element of a (bt, C, S) tile -> (bt, 1, 1).

    Two single-axis reductions (lane then sublane) keep the lowering simple."""
    ab = a * b
    return jnp.abs(jnp.sum(jnp.sum(ab, axis=2, keepdims=True), axis=1, keepdims=True))


def cg_kernel(m_ref, rhs_ref, x0_ref, out_ref, *, cg_iter, cg_tol, lam):
    """One full CG solve for a (bt, C, S) batch tile (one grid step)."""
    eps = jnp.float32(1e-10)
    m = m_ref[...]            # (bt, Cp, Cp)  SPD channel-mixing operator
    rhs = rhs_ref[...]        # (bt, Cp, Sp)  right-hand side tile
    x = x0_ref[...]           # (bt, Cp, Sp)  initial guess tile

    def lhs(v):               # batched MXU contraction along the channel axis
        return (jnp.einsum("bij,bjs->bis", m, v,
                           preferred_element_type=jnp.float32) + lam * v)

    r = rhs - lhs(x)
    p = r
    rTr = _fn(r, r)
    # 1.0 while the loop has not "broken" yet (emulates the data-dependent break).
    active0 = jnp.ones((1, 1, 1), jnp.float32)

    def body(i, carry):
        x, r, p, rTr, active = carry
        Ap = lhs(p)
        # Scalar gating: once the solve has broken, alpha == 0 so x and r freeze
        # (x, r are updated before the break test in the reference loop).
        alpha = (rTr / (_fn(p, Ap) + eps)) * active          # (bt, 1, 1)
        x = x + alpha * p
        r = r - alpha * Ap
        rTrNew = _fn(r, r)
        # Reference break: sum of sqrt(rTrNew) over the whole batch (this tile).
        resid = jnp.sum(jnp.sqrt(rTrNew + eps), keepdims=True)      # (1, 1, 1)
        active_next = active * (resid >= cg_tol).astype(jnp.float32)
        # p, rTr are only assigned when the loop does NOT break (reference ordering).
        beta = rTrNew / (rTr + eps)
        beta_eff = jnp.where(active_next > 0.0, beta, jnp.ones_like(beta))
        p = active_next * r + beta_eff * p                   # frozen when inactive
        rTr = jnp.where(active_next > 0.0, rTrNew, rTr)
        return (x, r, p, rTr, active_next)

    # Short fixed trip count: fully unroll for LLO scheduler visibility.
    x, r, p, rTr, active = jax.lax.fori_loop(
        0, cg_iter, body, (x, r, p, rTr, active0), unroll=True)
    out_ref[...] = x.astype(out_ref.dtype)


def cg_block_pallas(m, rhs, x0, cg_iter, cg_tol, lam=0.0):
    """Wrapper: flatten (B,C,D,H,W) -> (B,C,S), pad C->8k, S->128k, run tiled kernel."""
    B, C = rhs.shape[:2]
    S = int(np.prod(rhs.shape[2:]))
    Cp = ((max(C, 8) + 7) // 8) * 8
    Sp = ((max(S, 128) + 127) // 128) * 128

    rhs3 = rhs.reshape(B, C, S).astype(jnp.float32)
    x03 = x0.reshape(B, C, S).astype(jnp.float32)
    m2 = m.astype(jnp.float32)
    if (Cp, Sp) != (C, S):
        # Zero-padded channels / lanes start at zero and stay zero through every CG
        # update and contribute nothing to the reductions -> semantics preserving.
        rhs3 = jnp.pad(rhs3, ((0, 0), (0, Cp - C), (0, Sp - S)))
        x03 = jnp.pad(x03, ((0, 0), (0, Cp - C), (0, Sp - S)))
        m2 = jnp.pad(m2, ((0, Cp - C), (0, Cp - C)))

    # Batch tile: whole batch in one grid step when it fits VMEM comfortably (exact
    # reference break semantics); otherwise split the batch across the grid.
    per_b_bytes = Cp * Sp * 4
    bt = int(max(1, min(B, (24 * 1024 * 1024) // (per_b_bytes * 10))))
    nt = -(-B // bt)
    Bp = nt * bt
    if Bp != B:
        # TODO(synk): with more than one batch tile the break test is per tile (and
        # zero-padded rows add sqrt(eps) to the residual sum); the reference uses one
        # global batch sum. Identical whenever cgTol never triggers mid-run.
        rhs3 = jnp.pad(rhs3, ((0, Bp - B), (0, 0), (0, 0)))
        x03 = jnp.pad(x03, ((0, Bp - B), (0, 0), (0, 0)))

    m_b = jnp.broadcast_to(m2[None], (bt, Cp, Cp))

    kernel = functools.partial(
        cg_kernel, cg_iter=int(cg_iter), cg_tol=float(cg_tol), lam=float(lam))

    tile_bytes = bt * Cp * Sp * 4
    vmem_limit = int(min(100 * 2**20, max(32 * 2**20, 14 * tile_bytes)))
    flops = int((cg_iter + 1) * Bp * (2 * Cp * Cp * Sp + 8 * Cp * Sp))
    cost = pl.CostEstimate(
        flops=flops,
        transcendentals=int(cg_iter * Bp),
        bytes_accessed=int(4 * Bp * Cp * Sp * 4),
    )

    batch_spec = lambda: pl.BlockSpec((bt, Cp, Sp), lambda t: (t, 0, 0))

    out = pl.pallas_call(
        kernel,
        out_shape=jax.ShapeDtypeStruct((Bp, Cp, Sp), jnp.float32),
        grid=(nt,),
        in_specs=[
            pl.BlockSpec((bt, Cp, Cp), lambda t: (0, 0, 0)),   # operator, resident
            batch_spec(),                                       # rhs tile
            batch_spec(),                                       # x0 tile
        ],
        out_specs=batch_spec(),
        input_output_aliases={2: 0},                            # write x into x0 buffer
        compiler_params=pltpu.CompilerParams(
            dimension_semantics=("parallel",),
            vmem_limit_bytes=vmem_limit,
        ),
        cost_estimate=cost,
    )(m_b, rhs3, x03)
    return out[:B, :C, :S].reshape(rhs.shape)


def cg_block_ref(lhs_fn, rhs, x0, cg_iter, cg_tol):
    """Pure-JAX transcription of the PyTorch reference (same control flow)."""
    fn = lambda a, b: jnp.abs(jnp.sum(jnp.conj(a) * b, axis=(-1, -2, -3, -4)))
    eps = jnp.float32(1e-10)
    x = x0
    r = rhs - lhs_fn(x0)
    p = r
    rTr = fn(r, r)
    for _ in range(cg_iter):
        Ap = lhs_fn(p)
        alpha = rTr / (fn(p, Ap) + eps)
        x = x + alpha[:, None, None, None, None] * p
        r = r - alpha[:, None, None, None, None] * Ap
        rTrNew = fn(r, r)
        if float(jnp.sum(jnp.sqrt(rTrNew + eps))) < cg_tol:
            break
        beta = rTrNew / (rTr + eps)
        p = r + beta[:, None, None, None, None] * p
        rTr = rTrNew
    return x


if __name__ == "__main__":
    B, C, D, H, W = 2, 8, 2, 8, 8          # small 5-D shapes consistent with the module
    cg_iter, cg_tol, lam = 6, 1e-9, 0.05

    key = jax.random.PRNGKey(0)
    k1, k2, k3 = jax.random.split(key, 3)
    A = jax.random.normal(k1, (C, C), jnp.float32)
    M = A @ A.T / C + jnp.eye(C, dtype=jnp.float32)   # deterministic SPD operator
    rhs = jax.random.normal(k2, (B, C, D, H, W), jnp.float32)
    x0 = jax.random.normal(k3, (B, C, D, H, W), jnp.float32)

    out = cg_block_pallas(M, rhs, x0, cg_iter, cg_tol, lam)
    out = jax.block_until_ready(out)

    # Reference check (plain JAX, mirrors the PyTorch forward).
    def lhs_fn(v):
        v3 = v.reshape(B, C, -1)
        y = jnp.einsum("ij,bjs->bis", M, v3,
                       precision=jax.lax.Precision.HIGHEST) + lam * v3
        return y.reshape(v.shape)

    ref = cg_block_ref(lhs_fn, rhs, x0, cg_iter, cg_tol)
    err = float(jnp.max(jnp.abs(out - ref)))
    assert err < 2e-3, f"max abs err {err}"
    print("KERNEL_OK")
</pallas_src>

<mosaic_0001>
module attributes {stable_mosaic.version = 11 : i64} {
  func.func @cg_kernel(%arg0: i32, %arg1: memref<2x8x8xf32, #tpu.memory_space<vmem>>, %arg2: memref<2x8x128xf32, #tpu.memory_space<vmem>>, %arg3: memref<2x8x128xf32, #tpu.memory_space<vmem>>, %arg4: memref<2x8x128xf32, #tpu.memory_space<vmem>>) attributes {dimension_semantics = [#tpu.dimension_semantics<parallel>], iteration_bounds = array<i64: 1>, scalar_prefetch = 0 : i64, scratch_operands = 0 : i64, tpu.core_type = #tpu.core_type<tc>, window_params = [{pipeline_mode = #tpu.pipeline_mode<synchronous>, transform_indices = @transform_0, window_bounds = array<i64: 2, 8, 8>}, {transform_indices = @transform_1, window_bounds = array<i64: 2, 8, 128>}, {transform_indices = @transform_2, window_bounds = array<i64: 2, 8, 128>}, {transform_indices = @transform_3, window_bounds = array<i64: 2, 8, 128>}]} {
    %c0 = arith.constant 0 : index
    %c0_0 = arith.constant 0 : index
    %c0_1 = arith.constant 0 : index
    %0 = vector.load %arg1[%c0, %c0_0, %c0_1] : memref<2x8x8xf32, #tpu.memory_space<vmem>>, vector<2x8x8xf32>
    %c0_2 = arith.constant 0 : index
    %c0_3 = arith.constant 0 : index
    %c0_4 = arith.constant 0 : index
    %1 = vector.load %arg2[%c0_2, %c0_3, %c0_4] : memref<2x8x128xf32, #tpu.memory_space<vmem>>, vector<2x8x128xf32>
    %c0_5 = arith.constant 0 : index
    %c0_6 = arith.constant 0 : index
    %c0_7 = arith.constant 0 : index
    %2 = vector.load %arg3[%c0_5, %c0_6, %c0_7] : memref<2x8x128xf32, #tpu.memory_space<vmem>>, vector<2x8x128xf32>
    "tpu.trace_start"() <{level = 10 : i32, message = "bij,bjs->bis"}> : () -> ()
    %cst = arith.constant dense<0.000000e+00> : vector<2x8x128xf32>
    %3 = tpu.matmul %0, %2, %cst {dimension_numbers = #tpu.dot_dimension_numbers<[2], [1], [1], [2], [0, 0, 0, 1, 1, 2], [0], [0]>} : vector<2x8x8xf32>, vector<2x8x128xf32>, vector<2x8x128xf32> -> vector<2x8x128xf32>
    "tpu.trace_stop"() : () -> ()
    %cst_8 = arith.constant 5.000000e-02 : f32
    %4 = vector.broadcast %cst_8 : f32 to vector<2x8x128xf32>
    %5 = arith.mulf %4, %2 : vector<2x8x128xf32>
    %6 = arith.addf %3, %5 : vector<2x8x128xf32>
    %7 = arith.subf %1, %6 : vector<2x8x128xf32>
    %8 = arith.mulf %7, %7 : vector<2x8x128xf32>
    %cst_9 = arith.constant dense<0.000000e+00> : vector<2x8xf32>
    %9 = vector.multi_reduction <add>, %8, %cst_9 [2] : vector<2x8x128xf32> to vector<2x8xf32>
    %10 = vector.shape_cast %9 : vector<2x8xf32> to vector<2x8x1xf32>
    %cst_10 = arith.constant dense<0.000000e+00> : vector<2x1xf32>
    %11 = vector.multi_reduction <add>, %10, %cst_10 [1] : vector<2x8x1xf32> to vector<2x1xf32>
    %12 = vector.shape_cast %11 : vector<2x1xf32> to vector<2x1x1xf32>
    %13 = math.absf %12 : vector<2x1x1xf32>
    %cst_11 = arith.constant 1.000000e+00 : f32
    %14 = vector.broadcast %cst_11 : f32 to vector<1x1x1xf32>
    %cst_12 = arith.constant 1.000000e-10 : f32
    %c0_i32 = arith.constant 0 : i32
    "tpu.trace_start"() <{level = 10 : i32, message = "bij,bjs->bis"}> : () -> ()
    %cst_13 = arith.constant dense<0.000000e+00> : vector<2x8x128xf32>
    %15 = tpu.matmul %0, %7, %cst_13 {dimension_numbers = #tpu.dot_dimension_numbers<[2], [1], [1], [2], [0, 0, 0, 1, 1, 2], [0], [0]>} : vector<2x8x8xf32>, vector<2x8x128xf32>, vector<2x8x128xf32> -> vector<2x8x128xf32>
    "tpu.trace_stop"() : () -> ()
    %cst_14 = arith.constant 5.000000e-02 : f32
    %16 = vector.broadcast %cst_14 : f32 to vector<2x8x128xf32>
    %17 = arith.mulf %16, %7 : vector<2x8x128xf32>
    %18 = arith.addf %15, %17 : vector<2x8x128xf32>
    %19 = arith.mulf %7, %18 : vector<2x8x128xf32>
    %cst_15 = arith.constant dense<0.000000e+00> : vector<2x8xf32>
    %20 = vector.multi_reduction <add>, %19, %cst_15 [2] : vector<2x8x128xf32> to vector<2x8xf32>
    %21 = vector.shape_cast %20 : vector<2x8xf32> to vector<2x8x1xf32>
    %cst_16 = arith.constant dense<0.000000e+00> : vector<2x1xf32>
    %22 = vector.multi_reduction <add>, %21, %cst_16 [1] : vector<2x8x1xf32> to vector<2x1xf32>
    %23 = vector.shape_cast %22 : vector<2x1xf32> to vector<2x1x1xf32>
    %24 = math.absf %23 : vector<2x1x1xf32>
    %25 = vector.broadcast %cst_12 : f32 to vector<2x1x1xf32>
    %26 = arith.addf %24, %25 : vector<2x1x1xf32>
    %27 = arith.divf %13, %26 : vector<2x1x1xf32>
    %28 = vector.broadcast %14 : vector<1x1x1xf32> to vector<2x1x1xf32>
    %29 = arith.mulf %27, %28 : vector<2x1x1xf32>
    %30 = vector.broadcast %29 : vector<2x1x1xf32> to vector<2x8x128xf32>
    %31 = arith.mulf %30, %7 : vector<2x8x128xf32>
    %32 = arith.addf %2, %31 : vector<2x8x128xf32>
    %33 = vector.broadcast %29 : vector<2x1x1xf32> to vector<2x8x128xf32>
    %34 = arith.mulf %33, %18 : vector<2x8x128xf32>
    %35 = arith.subf %7, %34 : vector<2x8x128xf32>
    %36 = arith.mulf %35, %35 : vector<2x8x128xf32>
    %cst_17 = arith.constant dense<0.000000e+00> : vector<2x8xf32>
    %37 = vector.multi_reduction <add>, %36, %cst_17 [2] : vector<2x8x128xf32> to vector<2x8xf32>
    %38 = vector.shape_cast %37 : vector<2x8xf32> to vector<2x8x1xf32>
    %cst_18 = arith.constant dense<0.000000e+00> : vector<2x1xf32>
    %39 = vector.multi_reduction <add>, %38, %cst_18 [1] : vector<2x8x1xf32> to vector<2x1xf32>
    %40 = vector.shape_cast %39 : vector<2x1xf32> to vector<2x1x1xf32>
    %41 = math.absf %40 : vector<2x1x1xf32>
    %42 = vector.broadcast %cst_12 : f32 to vector<2x1x1xf32>
    %43 = arith.addf %41, %42 : vector<2x1x1xf32>
    %44 = math.sqrt %43 : vector<2x1x1xf32>
    %45 = vector.shape_cast %44 : vector<2x1x1xf32> to vector<1x2x1x1xf32>
    %cst_19 = arith.constant dense<0.000000e+00> : vector<1xf32>
    %46 = vector.multi_reduction <add>, %45, %cst_19 [1, 2, 3] : vector<1x2x1x1xf32> to vector<1xf32>
    %47 = vector.shape_cast %46 : vector<1xf32> to vector<1x1x1x1xf32>
    %48 = vector.extract %47[0, 0, 0, 0] : f32 from vector<1x1x1x1xf32>
    %49 = vector.broadcast %48 : f32 to vector<1x1x1xf32>
    %cst_20 = arith.constant 9.99999971E-10 : f32
    %50 = vector.broadcast %cst_20 : f32 to vector<1x1x1xf32>
    %51 = arith.cmpf oge, %49, %50 : vector<1x1x1xf32>
    %52 = arith.extui %51 : vector<1x1x1xi1> to vector<1x1x1xi32>
    %53 = arith.sitofp %52 : vector<1x1x1xi32> to vector<1x1x1xf32>
    %54 = arith.mulf %14, %53 : vector<1x1x1xf32>
    %55 = vector.broadcast %cst_12 : f32 to vector<2x1x1xf32>
    %56 = arith.addf %13, %55 : vector<2x1x1xf32>
    %57 = arith.divf %41, %56 : vector<2x1x1xf32>
    %cst_21 = arith.constant 0.000000e+00 : f32
    %58 = vector.broadcast %cst_21 : f32 to vector<1x1x1xf32>
    %59 = arith.cmpf ogt, %54, %58 : vector<1x1x1xf32>
    %cst_22 = arith.constant 1.000000e+00 : f32
    %60 = vector.broadcast %cst_22 : f32 to vector<2x1x1xf32>
    %61 = vector.shape_cast %59 : vector<1x1x1xi1> to vector<1x1x1xi1>
    %62 = vector.broadcast %61 : vector<1x1x1xi1> to vector<2x1x1xi1>
    %63 = arith.select %62, %57, %60 : vector<2x1x1xi1>, vector<2x1x1xf32>
    %64 = vector.broadcast %54 : vector<1x1x1xf32> to vector<2x8x128xf32>
    %65 = arith.mulf %64, %35 : vector<2x8x128xf32>
    %66 = vector.broadcast %63 : vector<2x1x1xf32> to vector<2x8x128xf32>
    %67 = arith.mulf %66, %7 : vector<2x8x128xf32>
    %68 = arith.addf %65, %67 : vector<2x8x128xf32>
    %cst_23 = arith.constant 0.000000e+00 : f32
    %69 = vector.broadcast %cst_23 : f32 to vector<1x1x1xf32>
    %70 = arith.cmpf ogt, %54, %69 : vector<1x1x1xf32>
    %71 = vector.shape_cast %70 : vector<1x1x1xi1> to vector<1x1x1xi1>
    %72 = vector.broadcast %71 : vector<1x1x1xi1> to vector<2x1x1xi1>
    %73 = arith.select %72, %41, %13 : vector<2x1x1xi1>, vector<2x1x1xf32>
    %c1_i32 = arith.constant 1 : i32
    "tpu.trace_start"() <{level = 10 : i32, message = "bij,bjs->bis"}> : () -> ()
    %cst_24 = arith.constant dense<0.000000e+00> : vector<2x8x128xf32>
    %74 = tpu.matmul %0, %68, %cst_24 {dimension_numbers = #tpu.dot_dimension_numbers<[2], [1], [1], [2], [0, 0, 0, 1, 1, 2], [0], [0]>} : vector<2x8x8xf32>, vector<2x8x128xf32>, vector<2x8x128xf32> -> vector<2x8x128xf32>
    "tpu.trace_stop"() : () -> ()
    %cst_25 = arith.constant 5.000000e-02 : f32
    %75 = vector.broadcast %cst_25 : f32 to vector<2x8x128xf32>
    %76 = arith.mulf %75, %68 : vector<2x8x128xf32>
    %77 = arith.addf %74, %76 : vector<2x8x128xf32>
    %78 = arith.mulf %68, %77 : vector<2x8x128xf32>
    %cst_26 = arith.constant dense<0.000000e+00> : vector<2x8xf32>
    %79 = vector.multi_reduction <add>, %78, %cst_26 [2] : vector<2x8x128xf32> to vector<2x8xf32>
    %80 = vector.shape_cast %79 : vector<2x8xf32> to vector<2x8x1xf32>
    %cst_27 = arith.constant dense<0.000000e+00> : vector<2x1xf32>
    %81 = vector.multi_reduction <add>, %80, %cst_27 [1] : vector<2x8x1xf32> to vector<2x1xf32>
    %82 = vector.shape_cast %81 : vector<2x1xf32> to vector<2x1x1xf32>
    %83 = math.absf %82 : vector<2x1x1xf32>
    %84 = vector.broadcast %cst_12 : f32 to vector<2x1x1xf32>
    %85 = arith.addf %83, %84 : vector<2x1x1xf32>
    %86 = arith.divf %73, %85 : vector<2x1x1xf32>
    %87 = vector.broadcast %54 : vector<1x1x1xf32> to vector<2x1x1xf32>
    %88 = arith.mulf %86, %87 : vector<2x1x1xf32>
    %89 = vector.broadcast %88 : vector<2x1x1xf32> to vector<2x8x128xf32>
    %90 = arith.mulf %89, %68 : vector<2x8x128xf32>
    %91 = arith.addf %32, %90 : vector<2x8x128xf32>
    %92 = vector.broadcast %88 : vector<2x1x1xf32> to vector<2x8x128xf32>
    %93 = arith.mulf %92, %77 : vector<2x8x128xf32>
    %94 = arith.subf %35, %93 : vector<2x8x128xf32>
    %95 = arith.mulf %94, %94 : vector<2x8x128xf32>
    %cst_28 = arith.constant dense<0.000000e+00> : vector<2x8xf32>
    %96 = vector.multi_reduction <add>, %95, %cst_28 [2] : vector<2x8x128xf32> to vector<2x8xf32>
    %97 = vector.shape_cast %96 : vector<2x8xf32> to vector<2x8x1xf32>
    %cst_29 = arith.constant dense<0.000000e+00> : vector<2x1xf32>
    %98 = vector.multi_reduction <add>, %97, %cst_29 [1] : vector<2x8x1xf32> to vector<2x1xf32>
    %99 = vector.shape_cast %98 : vector<2x1xf32> to vector<2x1x1xf32>
    %100 = math.absf %99 : vector<2x1x1xf32>
    %101 = vector.broadcast %cst_12 : f32 to vector<2x1x1xf32>
    %102 = arith.addf %100, %101 : vector<2x1x1xf32>
    %103 = math.sqrt %102 : vector<2x1x1xf32>
    %104 = vector.shape_cast %103 : vector<2x1x1xf32> to vector<1x2x1x1xf32>
    %cst_30 = arith.constant dense<0.000000e+00> : vector<1xf32>
    %105 = vector.multi_reduction <add>, %104, %cst_30 [1, 2, 3] : vector<1x2x1x1xf32> to vector<1xf32>
    %106 = vector.shape_cast %105 : vector<1xf32> to vector<1x1x1x1xf32>
    %107 = vector.extract %106[0, 0, 0, 0] : f32 from vector<1x1x1x1xf32>
    %108 = vector.broadcast %107 : f32 to vector<1x1x1xf32>
    %cst_31 = arith.constant 9.99999971E-10 : f32
    %109 = vector.broadcast %cst_31 : f32 to vector<1x1x1xf32>
    %110 = arith.cmpf oge, %108, %109 : vector<1x1x1xf32>
    %111 = arith.extui %110 : vector<1x1x1xi1> to vector<1x1x1xi32>
    %112 = arith.sitofp %111 : vector<1x1x1xi32> to vector<1x1x1xf32>
    %113 = arith.mulf %54, %112 : vector<1x1x1xf32>
    %114 = vector.broadcast %cst_12 : f32 to vector<2x1x1xf32>
    %115 = arith.addf %73, %114 : vector<2x1x1xf32>
    %116 = arith.divf %100, %115 : vector<2x1x1xf32>
    %cst_32 = arith.constant 0.000000e+00 : f32
    %117 = vector.broadcast %cst_32 : f32 to vector<1x1x1xf32>
    %118 = arith.cmpf ogt, %113, %117 : vector<1x1x1xf32>
    %cst_33 = arith.constant 1.000000e+00 : f32
    %119 = vector.broadcast %cst_33 : f32 to vector<2x1x1xf32>
    %120 = vector.shape_cast %118 : vector<1x1x1xi1> to vector<1x1x1xi1>
    %121 = vector.broadcast %120 : vector<1x1x1xi1> to vector<2x1x1xi1>
    %122 = arith.select %121, %116, %119 : vector<2x1x1xi1>, vector<2x1x1xf32>
    %123 = vector.broadcast %113 : vector<1x1x1xf32> to vector<2x8x128xf32>
    %124 = arith.mulf %123, %94 : vector<2x8x128xf32>
    %125 = vector.broadcast %122 : vector<2x1x1xf32> to vector<2x8x128xf32>
    %126 = arith.mulf %125, %68 : vector<2x8x128xf32>
    %127 = arith.addf %124, %126 : vector<2x8x128xf32>
    %cst_34 = arith.constant 0.000000e+00 : f32
    %128 = vector.broadcast %cst_34 : f32 to vector<1x1x1xf32>
    %129 = arith.cmpf ogt, %113, %128 : vector<1x1x1xf32>
    %130 = vector.shape_cast %129 : vector<1x1x1xi1> to vector<1x1x1xi1>
    %131 = vector.broadcast %130 : vector<1x1x1xi1> to vector<2x1x1xi1>
    %132 = arith.select %131, %100, %73 : vector<2x1x1xi1>, vector<2x1x1xf32>
    %c2_i32 = arith.constant 2 : i32
    "tpu.trace_start"() <{level = 10 : i32, message = "bij,bjs->bis"}> : () -> ()
    %cst_35 = arith.constant dense<0.000000e+00> : vector<2x8x128xf32>
    %133 = tpu.matmul %0, %127, %cst_35 {dimension_numbers = #tpu.dot_dimension_numbers<[2], [1], [1], [2], [0, 0, 0, 1, 1, 2], [0], [0]>} : vector<2x8x8xf32>, vector<2x8x128xf32>, vector<2x8x128xf32> -> vector<2x8x128xf32>
    "tpu.trace_stop"() : () -> ()
    %cst_36 = arith.constant 5.000000e-02 : f32
    %134 = vector.broadcast %cst_36 : f32 to vector<2x8x128xf32>
    %135 = arith.mulf %134, %127 : vector<2x8x128xf32>
    %136 = arith.addf %133, %135 : vector<2x8x128xf32>
    %137 = arith.mulf %127, %136 : vector<2x8x128xf32>
    %cst_37 = arith.constant dense<0.000000e+00> : vector<2x8xf32>
    %138 = vector.multi_reduction <add>, %137, %cst_37 [2] : vector<2x8x128xf32> to vector<2x8xf32>
    %139 = vector.shape_cast %138 : vector<2x8xf32> to vector<2x8x1xf32>
    %cst_38 = arith.constant dense<0.000000e+00> : vector<2x1xf32>
    %140 = vector.multi_reduction <add>, %139, %cst_38 [1] : vector<2x8x1xf32> to vector<2x1xf32>
    %141 = vector.shape_cast %140 : vector<2x1xf32> to vector<2x1x1xf32>
    %142 = math.absf %141 : vector<2x1x1xf32>
    %143 = vector.broadcast %cst_12 : f32 to vector<2x1x1xf32>
    %144 = arith.addf %142, %143 : vector<2x1x1xf32>
    %145 = arith.divf %132, %144 : vector<2x1x1xf32>
    %146 = vector.broadcast %113 : vector<1x1x1xf32> to vector<2x1x1xf32>
    %147 = arith.mulf %145, %146 : vector<2x1x1xf32>
    %148 = vector.broadcast %147 : vector<2x1x1xf32> to vector<2x8x128xf32>
    %149 = arith.mulf %148, %127 : vector<2x8x128xf32>
    %150 = arith.addf %91, %149 : vector<2x8x128xf32>
    %151 = vector.broadcast %147 : vector<2x1x1xf32> to vector<2x8x128xf32>
    %152 = arith.mulf %151, %136 : vector<2x8x128xf32>
    %153 = arith.subf %94, %152 : vector<2x8x128xf32>
    %154 = arith.mulf %153, %153 : vector<2x8x128xf32>
    %cst_39 = arith.constant dense<0.000000e+00> : vector<2x8xf32>
    %155 = vector.multi_reduction <add>, %154, %cst_39 [2] : vector<2x8x128xf32> to vector<2x8xf32>
    %156 = vector.shape_cast %155 : vector<2x8xf32> to vector<2x8x1xf32>
    %cst_40 = arith.constant dense<0.000000e+00> : vector<2x1xf32>
    %157 = vector.multi_reduction <add>, %156, %cst_40 [1] : vector<2x8x1xf32> to vector<2x1xf32>
    %158 = vector.shape_cast %157 : vector<2x1xf32> to vector<2x1x1xf32>
    %159 = math.absf %158 : vector<2x1x1xf32>
    %160 = vector.broadcast %cst_12 : f32 to vector<2x1x1xf32>
    %161 = arith.addf %159, %160 : vector<2x1x1xf32>
    %162 = math.sqrt %161 : vector<2x1x1xf32>
    %163 = vector.shape_cast %162 : vector<2x1x1xf32> to vector<1x2x1x1xf32>
    %cst_41 = arith.constant dense<0.000000e+00> : vector<1xf32>
    %164 = vector.multi_reduction <add>, %163, %cst_41 [1, 2, 3] : vector<1x2x1x1xf32> to vector<1xf32>
    %165 = vector.shape_cast %164 : vector<1xf32> to vector<1x1x1x1xf32>
    %166 = vector.extract %165[0, 0, 0, 0] : f32 from vector<1x1x1x1xf32>
    %167 = vector.broadcast %166 : f32 to vector<1x1x1xf32>
    %cst_42 = arith.constant 9.99999971E-10 : f32
    %168 = vector.broadcast %cst_42 : f32 to vector<1x1x1xf32>
    %169 = arith.cmpf oge, %167, %168 : vector<1x1x1xf32>
    %170 = arith.extui %169 : vector<1x1x1xi1> to vector<1x1x1xi32>
    %171 = arith.sitofp %170 : vector<1x1x1xi32> to vector<1x1x1xf32>
    %172 = arith.mulf %113, %171 : vector<1x1x1xf32>
    %173 = vector.broadcast %cst_12 : f32 to vector<2x1x1xf32>
    %174 = arith.addf %132, %173 : vector<2x1x1xf32>
    %175 = arith.divf %159, %174 : vector<2x1x1xf32>
    %cst_43 = arith.constant 0.000000e+00 : f32
    %176 = vector.broadcast %cst_43 : f32 to vector<1x1x1xf32>
    %177 = arith.cmpf ogt, %172, %176 : vector<1x1x1xf32>
    %cst_44 = arith.constant 1.000000e+00 : f32
    %178 = vector.broadcast %cst_44 : f32 to vector<2x1x1xf32>
    %179 = vector.shape_cast %177 : vector<1x1x1xi1> to vector<1x1x1xi1>
    %180 = vector.broadcast %179 : vector<1x1x1xi1> to vector<2x1x1xi1>
    %181 = arith.select %180, %175, %178 : vector<2x1x1xi1>, vector<2x1x1xf32>
    %182 = vector.broadcast %172 : vector<1x1x1xf32> to vector<2x8x128xf32>
    %183 = arith.mulf %182, %153 : vector<2x8x128xf32>
    %184 = vector.broadcast %181 : vector<2x1x1xf32> to vector<2x8x128xf32>
    %185 = arith.mulf %184, %127 : vector<2x8x128xf32>
    %186 = arith.addf %183, %185 : vector<2x8x128xf32>
    %cst_45 = arith.constant 0.000000e+00 : f32
    %187 = vector.broadcast %cst_45 : f32 to vector<1x1x1xf32>
    %188 = arith.cmpf ogt, %172, %187 : vector<1x1x1xf32>
    %189 = vector.shape_cast %188 : vector<1x1x1xi1> to vector<1x1x1xi1>
    %190 = vector.broadcast %189 : vector<1x1x1xi1> to vector<2x1x1xi1>
    %191 = arith.select %190, %159, %132 : vector<2x1x1xi1>, vector<2x1x1xf32>
    %c3_i32 = arith.constant 3 : i32
    "tpu.trace_start"() <{level = 10 : i32, message = "bij,bjs->bis"}> : () -> ()
    %cst_46 = arith.constant dense<0.000000e+00> : vector<2x8x128xf32>
    %192 = tpu.matmul %0, %186, %cst_46 {dimension_numbers = #tpu.dot_dimension_numbers<[2], [1], [1], [2], [0, 0, 0, 1, 1, 2], [0], [0]>} : vector<2x8x8xf32>, vector<2x8x128xf32>, vector<2x8x128xf32> -> vector<2x8x128xf32>
    "tpu.trace_stop"() : () -> ()
    %cst_47 = arith.constant 5.000000e-02 : f32
    %193 = vector.broadcast %cst_47 : f32 to vector<2x8x128xf32>
    %194 = arith.mulf %193, %186 : vector<2x8x128xf32>
    %195 = arith.addf %192, %194 : vector<2x8x128xf32>
    %196 = arith.mulf %186, %195 : vector<2x8x128xf32>
    %cst_48 = arith.constant dense<0.000000e+00> : vector<2x8xf32>
    %197 = vector.multi_reduction <add>, %196, %cst_48 [2] : vector<2x8x128xf32> to vector<2x8xf32>
    %198 = vector.shape_cast %197 : vector<2x8xf32> to vector<2x8x1xf32>
    %cst_49 = arith.constant dense<0.000000e+00> : vector<2x1xf32>
    %199 = vector.multi_reduction <add>, %198, %cst_49 [1] : vector<2x8x1xf32> to vector<2x1xf32>
    %200 = vector.shape_cast %199 : vector<2x1xf32> to vector<2x1x1xf32>
    %201 = math.absf %200 : vector<2x1x1xf32>
    %202 = vector.broadcast %cst_12 : f32 to vector<2x1x1xf32>
    %203 = arith.addf %201, %202 : vector<2x1x1xf32>
    %204 = arith.divf %191, %203 : vector<2x1x1xf32>
    %205 = vector.broadcast %172 : vector<1x1x1xf32> to vector<2x1x1xf32>
    %206 = arith.mulf %204, %205 : vector<2x1x1xf32>
    %207 = vector.broadcast %206 : vector<2x1x1xf32> to vector<2x8x128xf32>
    %208 = arith.mulf %207, %186 : vector<2x8x128xf32>
    %209 = arith.addf %150, %208 : vector<2x8x128xf32>
    %210 = vector.broadcast %206 : vector<2x1x1xf32> to vector<2x8x128xf32>
    %211 = arith.mulf %210, %195 : vector<2x8x128xf32>
    %212 = arith.subf %153, %211 : vector<2x8x128xf32>
    %213 = arith.mulf %212, %212 : vector<2x8x128xf32>
    %cst_50 = arith.constant dense<0.000000e+00> : vector<2x8xf32>
    %214 = vector.multi_reduction <add>, %213, %cst_50 [2] : vector<2x8x128xf32> to vector<2x8xf32>
    %215 = vector.shape_cast %214 : vector<2x8xf32> to vector<2x8x1xf32>
    %cst_51 = arith.constant dense<0.000000e+00> : vector<2x1xf32>
    %216 = vector.multi_reduction <add>, %215, %cst_51 [1] : vector<2x8x1xf32> to vector<2x1xf32>
    %217 = vector.shape_cast %216 : vector<2x1xf32> to vector<2x1x1xf32>
    %218 = math.absf %217 : vector<2x1x1xf32>
    %219 = vector.broadcast %cst_12 : f32 to vector<2x1x1xf32>
    %220 = arith.addf %218, %219 : vector<2x1x1xf32>
    %221 = math.sqrt %220 : vector<2x1x1xf32>
    %222 = vector.shape_cast %221 : vector<2x1x1xf32> to vector<1x2x1x1xf32>
    %cst_52 = arith.constant dense<0.000000e+00> : vector<1xf32>
    %223 = vector.multi_reduction <add>, %222, %cst_52 [1, 2, 3] : vector<1x2x1x1xf32> to vector<1xf32>
    %224 = vector.shape_cast %223 : vector<1xf32> to vector<1x1x1x1xf32>
    %225 = vector.extract %224[0, 0, 0, 0] : f32 from vector<1x1x1x1xf32>
    %226 = vector.broadcast %225 : f32 to vector<1x1x1xf32>
    %cst_53 = arith.constant 9.99999971E-10 : f32
    %227 = vector.broadcast %cst_53 : f32 to vector<1x1x1xf32>
    %228 = arith.cmpf oge, %226, %227 : vector<1x1x1xf32>
    %229 = arith.extui %228 : vector<1x1x1xi1> to vector<1x1x1xi32>
    %230 = arith.sitofp %229 : vector<1x1x1xi32> to vector<1x1x1xf32>
    %231 = arith.mulf %172, %230 : vector<1x1x1xf32>
    %232 = vector.broadcast %cst_12 : f32 to vector<2x1x1xf32>
    %233 = arith.addf %191, %232 : vector<2x1x1xf32>
    %234 = arith.divf %218, %233 : vector<2x1x1xf32>
    %cst_54 = arith.constant 0.000000e+00 : f32
    %235 = vector.broadcast %cst_54 : f32 to vector<1x1x1xf32>
    %236 = arith.cmpf ogt, %231, %235 : vector<1x1x1xf32>
    %cst_55 = arith.constant 1.000000e+00 : f32
    %237 = vector.broadcast %cst_55 : f32 to vector<2x1x1xf32>
    %238 = vector.shape_cast %236 : vector<1x1x1xi1> to vector<1x1x1xi1>
    %239 = vector.broadcast %238 : vector<1x1x1xi1> to vector<2x1x1xi1>
    %240 = arith.select %239, %234, %237 : vector<2x1x1xi1>, vector<2x1x1xf32>
    %241 = vector.broadcast %231 : vector<1x1x1xf32> to vector<2x8x128xf32>
    %242 = arith.mulf %241, %212 : vector<2x8x128xf32>
    %243 = vector.broadcast %240 : vector<2x1x1xf32> to vector<2x8x128xf32>
    %244 = arith.mulf %243, %186 : vector<2x8x128xf32>
    %245 = arith.addf %242, %244 : vector<2x8x128xf32>
    %cst_56 = arith.constant 0.000000e+00 : f32
    %246 = vector.broadcast %cst_56 : f32 to vector<1x1x1xf32>
    %247 = arith.cmpf ogt, %231, %246 : vector<1x1x1xf32>
    %248 = vector.shape_cast %247 : vector<1x1x1xi1> to vector<1x1x1xi1>
    %249 = vector.broadcast %248 : vector<1x1x1xi1> to vector<2x1x1xi1>
    %250 = arith.select %249, %218, %191 : vector<2x1x1xi1>, vector<2x1x1xf32>
    %c4_i32 = arith.constant 4 : i32
    "tpu.trace_start"() <{level = 10 : i32, message = "bij,bjs->bis"}> : () -> ()
    %cst_57 = arith.constant dense<0.000000e+00> : vector<2x8x128xf32>
    %251 = tpu.matmul %0, %245, %cst_57 {dimension_numbers = #tpu.dot_dimension_numbers<[2], [1], [1], [2], [0, 0, 0, 1, 1, 2], [0], [0]>} : vector<2x8x8xf32>, vector<2x8x128xf32>, vector<2x8x128xf32> -> vector<2x8x128xf32>
    "tpu.trace_stop"() : () -> ()
    %cst_58 = arith.constant 5.000000e-02 : f32
    %252 = vector.broadcast %cst_58 : f32 to vector<2x8x128xf32>
    %253 = arith.mulf %252, %245 : vector<2x8x128xf32>
    %254 = arith.addf %251, %253 : vector<2x8x128xf32>
    %255 = arith.mulf %245, %254 : vector<2x8x128xf32>
    %cst_59 = arith.constant dense<0.000000e+00> : vector<2x8xf32>
    %256 = vector.multi_reduction <add>, %255, %cst_59 [2] : vector<2x8x128xf32> to vector<2x8xf32>
    %257 = vector.shape_cast %256 : vector<2x8xf32> to vector<2x8x1xf32>
    %cst_60 = arith.constant dense<0.000000e+00> : vector<2x1xf32>
    %258 = vector.multi_reduction <add>, %257, %cst_60 [1] : vector<2x8x1xf32> to vector<2x1xf32>
    %259 = vector.shape_cast %258 : vector<2x1xf32> to vector<2x1x1xf32>
    %260 = math.absf %259 : vector<2x1x1xf32>
    %261 = vector.broadcast %cst_12 : f32 to vector<2x1x1xf32>
    %262 = arith.addf %260, %261 : vector<2x1x1xf32>
    %263 = arith.divf %250, %262 : vector<2x1x1xf32>
    %264 = vector.broadcast %231 : vector<1x1x1xf32> to vector<2x1x1xf32>
    %265 = arith.mulf %263, %264 : vector<2x1x1xf32>
    %266 = vector.broadcast %265 : vector<2x1x1xf32> to vector<2x8x128xf32>
    %267 = arith.mulf %266, %245 : vector<2x8x128xf32>
    %268 = arith.addf %209, %267 : vector<2x8x128xf32>
    %269 = vector.broadcast %265 : vector<2x1x1xf32> to vector<2x8x128xf32>
    %270 = arith.mulf %269, %254 : vector<2x8x128xf32>
    %271 = arith.subf %212, %270 : vector<2x8x128xf32>
    %272 = arith.mulf %271, %271 : vector<2x8x128xf32>
    %cst_61 = arith.constant dense<0.000000e+00> : vector<2x8xf32>
    %273 = vector.multi_reduction <add>, %272, %cst_61 [2] : vector<2x8x128xf32> to vector<2x8xf32>
    %274 = vector.shape_cast %273 : vector<2x8xf32> to vector<2x8x1xf32>
    %cst_62 = arith.constant dense<0.000000e+00> : vector<2x1xf32>
    %275 = vector.multi_reduction <add>, %274, %cst_62 [1] : vector<2x8x1xf32> to vector<2x1xf32>
    %276 = vector.shape_cast %275 : vector<2x1xf32> to vector<2x1x1xf32>
    %277 = math.absf %276 : vector<2x1x1xf32>
    %278 = vector.broadcast %cst_12 : f32 to vector<2x1x1xf32>
    %279 = arith.addf %277, %278 : vector<2x1x1xf32>
    %280 = math.sqrt %279 : vector<2x1x1xf32>
    %281 = vector.shape_cast %280 : vector<2x1x1xf32> to vector<1x2x1x1xf32>
    %cst_63 = arith.constant dense<0.000000e+00> : vector<1xf32>
    %282 = vector.multi_reduction <add>, %281, %cst_63 [1, 2, 3] : vector<1x2x1x1xf32> to vector<1xf32>
    %283 = vector.shape_cast %282 : vector<1xf32> to vector<1x1x1x1xf32>
    %284 = vector.extract %283[0, 0, 0, 0] : f32 from vector<1x1x1x1xf32>
    %285 = vector.broadcast %284 : f32 to vector<1x1x1xf32>
    %cst_64 = arith.constant 9.99999971E-10 : f32
    %286 = vector.broadcast %cst_64 : f32 to vector<1x1x1xf32>
    %287 = arith.cmpf oge, %285, %286 : vector<1x1x1xf32>
    %288 = arith.extui %287 : vector<1x1x1xi1> to vector<1x1x1xi32>
    %289 = arith.sitofp %288 : vector<1x1x1xi32> to vector<1x1x1xf32>
    %290 = arith.mulf %231, %289 : vector<1x1x1xf32>
    %291 = vector.broadcast %cst_12 : f32 to vector<2x1x1xf32>
    %292 = arith.addf %250, %291 : vector<2x1x1xf32>
    %293 = arith.divf %277, %292 : vector<2x1x1xf32>
    %cst_65 = arith.constant 0.000000e+00 : f32
    %294 = vector.broadcast %cst_65 : f32 to vector<1x1x1xf32>
    %295 = arith.cmpf ogt, %290, %294 : vector<1x1x1xf32>
    %cst_66 = arith.constant 1.000000e+00 : f32
    %296 = vector.broadcast %cst_66 : f32 to vector<2x1x1xf32>
    %297 = vector.shape_cast %295 : vector<1x1x1xi1> to vector<1x1x1xi1>
    %298 = vector.broadcast %297 : vector<1x1x1xi1> to vector<2x1x1xi1>
    %299 = arith.select %298, %293, %296 : vector<2x1x1xi1>, vector<2x1x1xf32>
    %300 = vector.broadcast %290 : vector<1x1x1xf32> to vector<2x8x128xf32>
    %301 = arith.mulf %300, %271 : vector<2x8x128xf32>
    %302 = vector.broadcast %299 : vector<2x1x1xf32> to vector<2x8x128xf32>
    %303 = arith.mulf %302, %245 : vector<2x8x128xf32>
    %304 = arith.addf %301, %303 : vector<2x8x128xf32>
    %cst_67 = arith.constant 0.000000e+00 : f32
    %305 = vector.broadcast %cst_67 : f32 to vector<1x1x1xf32>
    %306 = arith.cmpf ogt, %290, %305 : vector<1x1x1xf32>
    %307 = vector.shape_cast %306 : vector<1x1x1xi1> to vector<1x1x1xi1>
    %308 = vector.broadcast %307 : vector<1x1x1xi1> to vector<2x1x1xi1>
    %309 = arith.select %308, %277, %250 : vector<2x1x1xi1>, vector<2x1x1xf32>
    %c5_i32 = arith.constant 5 : i32
    "tpu.trace_start"() <{level = 10 : i32, message = "bij,bjs->bis"}> : () -> ()
    %cst_68 = arith.constant dense<0.000000e+00> : vector<2x8x128xf32>
    %310 = tpu.matmul %0, %304, %cst_68 {dimension_numbers = #tpu.dot_dimension_numbers<[2], [1], [1], [2], [0, 0, 0, 1, 1, 2], [0], [0]>} : vector<2x8x8xf32>, vector<2x8x128xf32>, vector<2x8x128xf32> -> vector<2x8x128xf32>
    "tpu.trace_stop"() : () -> ()
    %cst_69 = arith.constant 5.000000e-02 : f32
    %311 = vector.broadcast %cst_69 : f32 to vector<2x8x128xf32>
    %312 = arith.mulf %311, %304 : vector<2x8x128xf32>
    %313 = arith.addf %310, %312 : vector<2x8x128xf32>
    %314 = arith.mulf %304, %313 : vector<2x8x128xf32>
    %cst_70 = arith.constant dense<0.000000e+00> : vector<2x8xf32>
    %315 = vector.multi_reduction <add>, %314, %cst_70 [2] : vector<2x8x128xf32> to vector<2x8xf32>
    %316 = vector.shape_cast %315 : vector<2x8xf32> to vector<2x8x1xf32>
    %cst_71 = arith.constant dense<0.000000e+00> : vector<2x1xf32>
    %317 = vector.multi_reduction <add>, %316, %cst_71 [1] : vector<2x8x1xf32> to vector<2x1xf32>
    %318 = vector.shape_cast %317 : vector<2x1xf32> to vector<2x1x1xf32>
    %319 = math.absf %318 : vector<2x1x1xf32>
    %320 = vector.broadcast %cst_12 : f32 to vector<2x1x1xf32>
    %321 = arith.addf %319, %320 : vector<2x1x1xf32>
    %322 = arith.divf %309, %321 : vector<2x1x1xf32>
    %323 = vector.broadcast %290 : vector<1x1x1xf32> to vector<2x1x1xf32>
    %324 = arith.mulf %322, %323 : vector<2x1x1xf32>
    %325 = vector.broadcast %324 : vector<2x1x1xf32> to vector<2x8x128xf32>
    %326 = arith.mulf %325, %304 : vector<2x8x128xf32>
    %327 = arith.addf %268, %326 : vector<2x8x128xf32>
    %328 = vector.broadcast %324 : vector<2x1x1xf32> to vector<2x8x128xf32>
    %329 = arith.mulf %328, %313 : vector<2x8x128xf32>
    %330 = arith.subf %271, %329 : vector<2x8x128xf32>
    %331 = arith.mulf %330, %330 : vector<2x8x128xf32>
    %cst_72 = arith.constant dense<0.000000e+00> : vector<2x8xf32>
    %332 = vector.multi_reduction <add>, %331, %cst_72 [2] : vector<2x8x128xf32> to vector<2x8xf32>
    %333 = vector.shape_cast %332 : vector<2x8xf32> to vector<2x8x1xf32>
    %cst_73 = arith.constant dense<0.000000e+00> : vector<2x1xf32>
    %334 = vector.multi_reduction <add>, %333, %cst_73 [1] : vector<2x8x1xf32> to vector<2x1xf32>
    %335 = vector.shape_cast %334 : vector<2x1xf32> to vector<2x1x1xf32>
    %336 = math.absf %335 : vector<2x1x1xf32>
    %337 = vector.broadcast %cst_12 : f32 to vector<2x1x1xf32>
    %338 = arith.addf %336, %337 : vector<2x1x1xf32>
    %339 = math.sqrt %338 : vector<2x1x1xf32>
    %340 = vector.shape_cast %339 : vector<2x1x1xf32> to vector<1x2x1x1xf32>
    %cst_74 = arith.constant dense<0.000000e+00> : vector<1xf32>
    %341 = vector.multi_reduction <add>, %340, %cst_74 [1, 2, 3] : vector<1x2x1x1xf32> to vector<1xf32>
    %342 = vector.shape_cast %341 : vector<1xf32> to vector<1x1x1x1xf32>
    %343 = vector.extract %342[0, 0, 0, 0] : f32 from vector<1x1x1x1xf32>
    %344 = vector.broadcast %343 : f32 to vector<1x1x1xf32>
    %cst_75 = arith.constant 9.99999971E-10 : f32
    %345 = vector.broadcast %cst_75 : f32 to vector<1x1x1xf32>
    %346 = arith.cmpf oge, %344, %345 : vector<1x1x1xf32>
    %347 = arith.extui %346 : vector<1x1x1xi1> to vector<1x1x1xi32>
    %348 = arith.sitofp %347 : vector<1x1x1xi32> to vector<1x1x1xf32>
    %349 = arith.mulf %290, %348 : vector<1x1x1xf32>
    %350 = vector.broadcast %cst_12 : f32 to vector<2x1x1xf32>
    %351 = arith.addf %309, %350 : vector<2x1x1xf32>
    %352 = arith.divf %336, %351 : vector<2x1x1xf32>
    %cst_76 = arith.constant 0.000000e+00 : f32
    %353 = vector.broadcast %cst_76 : f32 to vector<1x1x1xf32>
    %354 = arith.cmpf ogt, %349, %353 : vector<1x1x1xf32>
    %cst_77 = arith.constant 1.000000e+00 : f32
    %355 = vector.broadcast %cst_77 : f32 to vector<2x1x1xf32>
    %356 = vector.shape_cast %354 : vector<1x1x1xi1> to vector<1x1x1xi1>
    %357 = vector.broadcast %356 : vector<1x1x1xi1> to vector<2x1x1xi1>
    %358 = arith.select %357, %352, %355 : vector<2x1x1xi1>, vector<2x1x1xf32>
    %359 = vector.broadcast %349 : vector<1x1x1xf32> to vector<2x8x128xf32>
    %360 = arith.mulf %359, %330 : vector<2x8x128xf32>
    %361 = vector.broadcast %358 : vector<2x1x1xf32> to vector<2x8x128xf32>
    %362 = arith.mulf %361, %304 : vector<2x8x128xf32>
    %363 = arith.addf %360, %362 : vector<2x8x128xf32>
    %cst_78 = arith.constant 0.000000e+00 : f32
    %364 = vector.broadcast %cst_78 : f32 to vector<1x1x1xf32>
    %365 = arith.cmpf ogt, %349, %364 : vector<1x1x1xf32>
    %366 = vector.shape_cast %365 : vector<1x1x1xi1> to vector<1x1x1xi1>
    %367 = vector.broadcast %366 : vector<1x1x1xi1> to vector<2x1x1xi1>
    %368 = arith.select %367, %336, %309 : vector<2x1x1xi1>, vector<2x1x1xf32>
    %c0_79 = arith.constant 0 : index
    %c0_80 = arith.constant 0 : index
    %c0_81 = arith.constant 0 : index
    %369 = vector.load %arg4[%c0_79, %c0_80, %c0_81] : memref<2x8x128xf32, #tpu.memory_space<vmem>>, vector<2x8x128xf32>
    tpu.vector_store %arg4[%c0_79, %c0_80, %c0_81], %327 {strides = array<i32>} : memref<2x8x128xf32, #tpu.memory_space<vmem>>, vector<2x8x128xf32>,
    return
  }
  func.func @transform_0(%arg0: i32) -> (i32, i32, i32) {
    %c0_i32 = arith.constant 0 : i32
    %c0_i32_0 = arith.constant 0 : i32
    %c0_i32_1 = arith.constant 0 : i32
    %c0_i32_2 = arith.constant 0 : i32
    return %c0_i32, %c0_i32_0, %c0_i32_1 : i32, i32, i32
  }
  func.func @transform_1(%arg0: i32) -> (i32, i32, i32) {
    %c0_i32 = arith.constant 0 : i32
    %c0_i32_0 = arith.constant 0 : i32
    %c0_i32_1 = arith.constant 0 : i32
    return %arg0, %c0_i32, %c0_i32_0 : i32, i32, i32
  }
  func.func @transform_2(%arg0: i32) -> (i32, i32, i32) {
    %c0_i32 = arith.constant 0 : i32
    %c0_i32_0 = arith.constant 0 : i32
    %c0_i32_1 = arith.constant 0 : i32
    return %arg0, %c0_i32, %c0_i32_0 : i32, i32, i32
  }
  func.func @transform_3(%arg0: i32) -> (i32, i32, i32) {
    %c0_i32 = arith.constant 0 : i32
    %c0_i32_0 = arith.constant 0 : i32
    %c0_i32_1 = arith.constant 0 : i32
    return %arg0, %c0_i32, %c0_i32_0 : i32, i32, i32
  }
}

</mosaic_0001>

<llo_original>
// kernel: tpu_custom_call.1
$region0: #{tpu_custom_call.1}
  #allocation0 [shape = 'u32[]', space=smem, size = 0x4, offset = 0x4, fixed_abs, tag = 'smem constant byte address 0x4 - core index']
  #allocation1 [shape = 'u32[144,128]{1,0:T(1,128)}', space=vmem, size = 0x12000, scoped, tag = 'internal scratch']
  %s0 = inlined_call_operand.vmem [shape: f32[2,8,8], index: 0, kind: input, shape index: {}]
  %s1 = inlined_call_operand.vmem [shape: f32[2,8,128], index: 1, kind: input, shape index: {}]
  %s2 = inlined_call_operand.hbm [shape: f32[2,8,128], index: 2, kind: input, shape index: {}, may-alias: {2,3}]
  %s3 = inlined_call_operand.hbm [shape: f32[2,8,128], index: 3, kind: output, shape index: {}, may-alias: {2,3}]
  %s4 = sld [smem:[#allocation0]]
  $region26: #{tpu_custom_call.1} parent=0
    _
  %s6 = ssub.s32 1, %s4
  %s7 = scalar_select 0, %s6, %s4
  $region1: #{tpu_custom_call.1} parent=0
    #allocation2 [shape = 'u8[8192]{0}', space=vmem, size = 0x2000, scoped, tag = 'input window, operand 2, single buffered']
    #allocation3 [shape = 's32[1]{0}', space=sflag, size = 0x4, scoped, tag = 'scoped memory for tpu_custom_call.1']
    #allocation4 [shape = 's32[1]{0}', space=sflag, size = 0x4, scoped, tag = 'scoped memory for tpu_custom_call.1']
    #allocation5 [shape = 'u8[8192]{0}', space=vmem, size = 0x2000, scoped, tag = 'output window, operand 0, single buffered']
    %8 = vsyncpa [#allocation3], 0
    %9 = vsyncpa [#allocation4], 0
    // Predicated region
    $region2: #{tpu_custom_call.1} parent=1 // pred_check
      _
    $region3: #{tpu_custom_call.1} parent=1 // pred_check_branch
      %11 = sbr.rel (0) target = $region5
    $region4: #{tpu_custom_call.1} parent=1 // pred_region
      _
    $region5: #{tpu_custom_call.1} parent=1 // pred_fallthru
      _
    // Predicated region
    $region6: #{tpu_custom_call.1} parent=1 // pred_check
      _
    $region7: #{tpu_custom_call.1} parent=1 // pred_check_branch
      %13 = sbr.rel (0) target = $region9
    $region8: #{tpu_custom_call.1} parent=1 // pred_region
      _
    $region9: #{tpu_custom_call.1} parent=1 // pred_fallthru
      _
    // Predicated region
    $region10: #{tpu_custom_call.1} parent=1 // pred_check
      _
    $region11: #{tpu_custom_call.1} parent=1 // pred_check_branch
      %15 = sbr.rel (0) target = $region13
    $region12: #{tpu_custom_call.1} parent=1 // pred_region
      %s17 = ssub.s32 256, 256
      %18 = vsyncadd [#allocation3], %s17
      %s19 = sshll.u32 [#allocation2], 4
      %s20 = int_to_ptr.vmem [resolvable:$true] %s19
      %25 = dma.hbm_to_vmem [thread:$0]  %s2, 256, %s20, [#allocation3], 128, 128, 8
    $region13: #{tpu_custom_call.1} parent=1 // pred_fallthru
      _
    // Predicated region
    $region14: #{tpu_custom_call.1} parent=1 // pred_check
      _
    $region15: #{tpu_custom_call.1} parent=1 // pred_check_branch
      %27 = sbr.rel (0) target = $region17
    $region16: #{tpu_custom_call.1} parent=1 // pred_region
      %28 = dma.done [#allocation3], 256
    $region17: #{tpu_custom_call.1} parent=1 // pred_fallthru
      _
    %v29 = vld [vmem:[%s0] sm:$0xff]
    %v30 = vld [vmem:[%s0 + $0x8] sm:$0xff]
    %v31 = vld [vmem:[%s1] sm:$0xff]
    %v32 = vld [vmem:[%s1 + $0x8] sm:$0xff]
    %v33 = vld [vmem:[#allocation2] sm:$0xff]
    %v34 = vld [vmem:[#allocation2 + $0x8] sm:$0xff]
    %v35 = vmul.f32 %v33, 0.05
    %v36 = vmul.f32 %v34, 0.05
    %vm37 = vcmask 64512
    %v39 = vsel %vm37, %v29, 0
    %41 = vmatprep.subr.mxu0 0.0
    %42 = vmatpush1.msra.mxu0 0.0
    %43 = vmatprep.subr.mxu0 0.0
    %44 = vmatpush1.msra.mxu0 0.0
    %45 = vmatprep.subr.mxu0 0.0
    %46 = vmatpush1.msra.mxu0 0.0
    %47 = vmatprep.subr.mxu0 0.0
    %48 = vmatpush1.msra.mxu0 0.0
    %49 = vmatprep.subr.mxu0 0.0
    %50 = vmatpush1.msra.mxu0 0.0
    %51 = vmatprep.subr.mxu0 0.0
    %52 = vmatpush1.msra.mxu0 0.0
    %53 = vmatprep.subr.mxu0 0.0
    %54 = vmatpush1.msra.mxu0 0.0
    %55 = vmatprep.subr.mxu0 0.0
    %56 = vmatpush1.msra.mxu0 0.0
    %57 = vmatprep.subr.mxu0 0.0
    %58 = vmatpush1.msra.mxu0 0.0
    %59 = vmatprep.subr.mxu0 0.0
    %60 = vmatpush1.msra.mxu0 0.0
    %61 = vmatprep.subr.mxu0 0.0
    %62 = vmatpush1.msra.mxu0 0.0
    %63 = vmatprep.subr.mxu0 0.0
    %64 = vmatpush1.msra.mxu0 0.0
    %65 = vmatprep.subr.mxu0 0.0
    %66 = vmatpush1.msra.mxu0 0.0
    %67 = vmatprep.subr.mxu0 0.0
    %68 = vmatpush1.msra.mxu0 0.0
    %69 = vmatprep.subr.mxu0 0.0
    %70 = vmatpush1.msra.mxu0 0.0
    %71 = vmatprep.subr.mxu0 0.0
    %72 = vmatpush1.msra.mxu0 %v33
    %73 = vmatprep.subr.mxu0 0.0
    %74 = vmatpush2.msra.mxu0 0.0
    %75 = vmatprep.subr.mxu0 0.0
    %76 = vmatpush2.msra.mxu0 0.0
    %77 = vmatprep.subr.mxu0 0.0
    %78 = vmatpush2.msra.mxu0 0.0
    %79 = vmatprep.subr.mxu0 0.0
    %80 = vmatpush2.msra.mxu0 0.0
    %81 = vmatprep.subr.mxu0 0.0
    %82 = vmatpush2.msra.mxu0 0.0
    %83 = vmatprep.subr.mxu0 0.0
    %84 = vmatpush2.msra.mxu0 0.0
    %85 = vmatprep.subr.mxu0 0.0
    %86 = vmatpush2.msra.mxu0 0.0
    %87 = vmatprep.subr.mxu0 0.0
    %88 = vmatpush2.msra.mxu0 0.0
    %89 = vmatprep.subr.mxu0 0.0
    %90 = vmatpush2.msra.mxu0 0.0
    %91 = vmatprep.subr.mxu0 0.0
    %92 = vmatpush2.msra.mxu0 0.0
    %93 = vmatprep.subr.mxu0 0.0
    %94 = vmatpush2.msra.mxu0 0.0
    %95 = vmatprep.subr.mxu0 0.0
    %96 = vmatpush2.msra.mxu0 0.0
    %97 = vmatprep.subr.mxu0 0.0
    %98 = vmatpush2.msra.mxu0 0.0
    %99 = vmatprep.subr.mxu0 0.0
    %100 = vmatpush2.msra.mxu0 0.0
    %101 = vmatprep.subr.mxu0 0.0
    %102 = vmatpush2.msra.mxu0 0.0
    %103 = vmatprep.subr.mxu0 0.0
    %104 = vmatpush2.msra.mxu0 0.0
    %105 = vmatprep.mubr.f32.mxu0 0.0
    %106 = vmatmul.mubr.f32.gmra.mxu0 %v39
    %v107 = vpop.f32.mrf.mxu0
    %v108 = vadd.f32 %v35, %v107
    %v109 = vpop.f32.mrf.mxu0
    %110 = vdwg.mxu0
    %v112 = vsel %vm37, %v30, 0
    %114 = vmatprep.subr.mxu0 0.0
    %115 = vmatpush1.msra.mxu0 0.0
    %116 = vmatprep.subr.mxu0 0.0
    %117 = vmatpush1.msra.mxu0 0.0
    %118 = vmatprep.subr.mxu0 0.0
    %119 = vmatpush1.msra.mxu0 0.0
    %120 = vmatprep.subr.mxu0 0.0
    %121 = vmatpush1.msra.mxu0 0.0
    %122 = vmatprep.subr.mxu0 0.0
    %123 = vmatpush1.msra.mxu0 0.0
    %124 = vmatprep.subr.mxu0 0.0
    %125 = vmatpush1.msra.mxu0 0.0
    %126 = vmatprep.subr.mxu0 0.0
    %127 = vmatpush1.msra.mxu0 0.0
    %128 = vmatprep.subr.mxu0 0.0
    %129 = vmatpush1.msra.mxu0 0.0
    %130 = vmatprep.subr.mxu0 0.0
    %131 = vmatpush1.msra.mxu0 0.0
    %132 = vmatprep.subr.mxu0 0.0
    %133 = vmatpush1.msra.mxu0 0.0
    %134 = vmatprep.subr.mxu0 0.0
    %135 = vmatpush1.msra.mxu0 0.0
    %136 = vmatprep.subr.mxu0 0.0
    %137 = vmatpush1.msra.mxu0 0.0
    %138 = vmatprep.subr.mxu0 0.0
    %139 = vmatpush1.msra.mxu0 0.0
    %140 = vmatprep.subr.mxu0 0.0
    %141 = vmatpush1.msra.mxu0 0.0
    %142 = vmatprep.subr.mxu0 0.0
    %143 = vmatpush1.msra.mxu0 0.0
    %144 = vmatprep.subr.mxu0 0.0
    %145 = vmatpush1.msra.mxu0 %v34
    %146 = vmatprep.subr.mxu0 0.0
    %147 = vmatpush2.msra.mxu0 0.0
    %148 = vmatprep.subr.mxu0 0.0
    %149 = vmatpush2.msra.mxu0 0.0
    %150 = vmatprep.subr.mxu0 0.0
    %151 = vmatpush2.msra.mxu0 0.0
    %152 = vmatprep.subr.mxu0 0.0
    %153 = vmatpush2.msra.mxu0 0.0
    %154 = vmatprep.subr.mxu0 0.0
    %155 = vmatpush2.msra.mxu0 0.0
    %156 = vmatprep.subr.mxu0 0.0
    %157 = vmatpush2.msra.mxu0 0.0
    %158 = vmatprep.subr.mxu0 0.0
    %159 = vmatpush2.msra.mxu0 0.0
    %160 = vmatprep.subr.mxu0 0.0
    %161 = vmatpush2.msra.mxu0 0.0
    %162 = vmatprep.subr.mxu0 0.0
    %163 = vmatpush2.msra.mxu0 0.0
    %164 = vmatprep.subr.mxu0 0.0
    %165 = vmatpush2.msra.mxu0 0.0
    %166 = vmatprep.subr.mxu0 0.0
    %167 = vmatpush2.msra.mxu0 0.0
    %168 = vmatprep.subr.mxu0 0.0
    %169 = vmatpush2.msra.mxu0 0.0
    %170 = vmatprep.subr.mxu0 0.0
    %171 = vmatpush2.msra.mxu0 0.0
    %172 = vmatprep.subr.mxu0 0.0
    %173 = vmatpush2.msra.mxu0 0.0
    %174 = vmatprep.subr.mxu0 0.0
    %175 = vmatpush2.msra.mxu0 0.0
    %176 = vmatprep.subr.mxu0 0.0
    %177 = vmatpush2.msra.mxu0 0.0
    %178 = vmatprep.mubr.f32.mxu0 0.0
    %179 = vmatmul.mubr.f32.gmra.mxu0 %v112
    %v180 = vpop.f32.mrf.mxu0
    %v181 = vadd.f32 %v36, %v180
    %v182 = vpop.f32.mrf.mxu0
    %183 = vdwg.mxu0
    %v184 = vsub.f32 %v31, %v108
    %v185 = vsub.f32 %v32, %v181
    %v186 = vmul.f32 %v184, %v184
    %v187 = vmul.f32 %v185, %v185
    %188 = vadd.xlane.f32.xlu0 %v186
    %v189 = vpop.xlane.xlu0 %188
    %190 = vadd.xlane.f32.xlu0 %v187
    %v191 = vpop.xlane.xlu0 %190
    %v192 = vrot.slane %v189, 4
    %v193 = vadd.f32 %v189, %v192
    %v194 = vrot.slane %v193, 2
    %v195 = vadd.f32 %v193, %v194
    %v196 = vrot.slane %v195, 1
    %v197 = vadd.f32 %v195, %v196
    %v198 = vrot.slane %v191, 4
    %v199 = vadd.f32 %v191, %v198
    %v200 = vrot.slane %v199, 2
    %v201 = vadd.f32 %v199, %v200
    %v202 = vrot.slane %v201, 1
    %v203 = vadd.f32 %v201, %v202
    %v204 = vand.u32 2147483647, %v197
    %v205 = vand.u32 2147483647, %v203
    %v206 = vmul.f32 %v184, 0.05
    %v207 = vmul.f32 %v185, 0.05
    %208 = vmatprep.subr.mxu0 0.0
    %209 = vmatpush1.msra.mxu0 0.0
    %210 = vmatprep.subr.mxu0 0.0
    %211 = vmatpush1.msra.mxu0 0.0
    %212 = vmatprep.subr.mxu0 0.0
    %213 = vmatpush1.msra.mxu0 0.0
    %214 = vmatprep.subr.mxu0 0.0
    %215 = vmatpush1.msra.mxu0 0.0
    %216 = vmatprep.subr.mxu0 0.0
    %217 = vmatpush1.msra.mxu0 0.0
    %218 = vmatprep.subr.mxu0 0.0
    %219 = vmatpush1.msra.mxu0 0.0
    %220 = vmatprep.subr.mxu0 0.0
    %221 = vmatpush1.msra.mxu0 0.0
    %222 = vmatprep.subr.mxu0 0.0
    %223 = vmatpush1.msra.mxu0 0.0
    %224 = vmatprep.subr.mxu0 0.0
    %225 = vmatpush1.msra.mxu0 0.0
    %226 = vmatprep.subr.mxu0 0.0
    %227 = vmatpush1.msra.mxu0 0.0
    %228 = vmatprep.subr.mxu0 0.0
    %229 = vmatpush1.msra.mxu0 0.0
    %230 = vmatprep.subr.mxu0 0.0
    %231 = vmatpush1.msra.mxu0 0.0
    %232 = vmatprep.subr.mxu0 0.0
    %233 = vmatpush1.msra.mxu0 0.0
    %234 = vmatprep.subr.mxu0 0.0
    %235 = vmatpush1.msra.mxu0 0.0
    %236 = vmatprep.subr.mxu0 0.0
    %237 = vmatpush1.msra.mxu0 0.0
    %238 = vmatprep.subr.mxu0 0.0
    %239 = vmatpush1.msra.mxu0 %v184
    %240 = vmatprep.subr.mxu0 0.0
    %241 = vmatpush2.msra.mxu0 0.0
    %242 = vmatprep.subr.mxu0 0.0
    %243 = vmatpush2.msra.mxu0 0.0
    %244 = vmatprep.subr.mxu0 0.0
    %245 = vmatpush2.msra.mxu0 0.0
    %246 = vmatprep.subr.mxu0 0.0
    %247 = vmatpush2.msra.mxu0 0.0
    %248 = vmatprep.subr.mxu0 0.0
    %249 = vmatpush2.msra.mxu0 0.0
    %250 = vmatprep.subr.mxu0 0.0
    %251 = vmatpush2.msra.mxu0 0.0
    %252 = vmatprep.subr.mxu0 0.0
    %253 = vmatpush2.msra.mxu0 0.0
    %254 = vmatprep.subr.mxu0 0.0
    %255 = vmatpush2.msra.mxu0 0.0
    %256 = vmatprep.subr.mxu0 0.0
    %257 = vmatpush2.msra.mxu0 0.0
    %258 = vmatprep.subr.mxu0 0.0
    %259 = vmatpush2.msra.mxu0 0.0
    %260 = vmatprep.subr.mxu0 0.0
    %261 = vmatpush2.msra.mxu0 0.0
    %262 = vmatprep.subr.mxu0 0.0
    %263 = vmatpush2.msra.mxu0 0.0
    %264 = vmatprep.subr.mxu0 0.0
    %265 = vmatpush2.msra.mxu0 0.0
    %266 = vmatprep.subr.mxu0 0.0
    %267 = vmatpush2.msra.mxu0 0.0
    %268 = vmatprep.subr.mxu0 0.0
    %269 = vmatpush2.msra.mxu0 0.0
    %270 = vmatprep.subr.mxu0 0.0
    %271 = vmatpush2.msra.mxu0 0.0
    %272 = vmatprep.mubr.f32.mxu0 0.0
    %273 = vmatmul.mubr.f32.gmra.mxu0 %v39
    %v274 = vpop.f32.mrf.mxu0
    %v275 = vadd.f32 %v206, %v274
    %v276 = vpop.f32.mrf.mxu0
    %277 = vdwg.mxu0
    %278 = vmatprep.subr.mxu0 0.0
    %279 = vmatpush1.msra.mxu0 0.0
    %280 = vmatprep.subr.mxu0 0.0
    %281 = vmatpush1.msra.mxu0 0.0
    %282 = vmatprep.subr.mxu0 0.0
    %283 = vmatpush1.msra.mxu0 0.0
    %284 = vmatprep.subr.mxu0 0.0
    %285 = vmatpush1.msra.mxu0 0.0
    %286 = vmatprep.subr.mxu0 0.0
    %287 = vmatpush1.msra.mxu0 0.0
    %288 = vmatprep.subr.mxu0 0.0
    %289 = vmatpush1.msra.mxu0 0.0
    %290 = vmatprep.subr.mxu0 0.0
    %291 = vmatpush1.msra.mxu0 0.0
    %292 = vmatprep.subr.mxu0 0.0
    %293 = vmatpush1.msra.mxu0 0.0
    %294 = vmatprep.subr.mxu0 0.0
    %295 = vmatpush1.msra.mxu0 0.0
    %296 = vmatprep.subr.mxu0 0.0
    %297 = vmatpush1.msra.mxu0 0.0
    %298 = vmatprep.subr.mxu0 0.0
    %299 = vmatpush1.msra.mxu0 0.0
    %300 = vmatprep.subr.mxu0 0.0
    %301 = vmatpush1.msra.mxu0 0.0
    %302 = vmatprep.subr.mxu0 0.0
    %303 = vmatpush1.msra.mxu0 0.0
    %304 = vmatprep.subr.mxu0 0.0
    %305 = vmatpush1.msra.mxu0 0.0
    %306 = vmatprep.subr.mxu0 0.0
    %307 = vmatpush1.msra.mxu0 0.0
    %308 = vmatprep.subr.mxu0 0.0
    %309 = vmatpush1.msra.mxu0 %v185
    %310 = vmatprep.subr.mxu0 0.0
    %311 = vmatpush2.msra.mxu0 0.0
    %312 = vmatprep.subr.mxu0 0.0
    %313 = vmatpush2.msra.mxu0 0.0
    %314 = vmatprep.subr.mxu0 0.0
    %315 = vmatpush2.msra.mxu0 0.0
    %316 = vmatprep.subr.mxu0 0.0
    %317 = vmatpush2.msra.mxu0 0.0
    %318 = vmatprep.subr.mxu0 0.0
    %319 = vmatpush2.msra.mxu0 0.0
    %320 = vmatprep.subr.mxu0 0.0
    %321 = vmatpush2.msra.mxu0 0.0
    %322 = vmatprep.subr.mxu0 0.0
    %323 = vmatpush2.msra.mxu0 0.0
    %324 = vmatprep.subr.mxu0 0.0
    %325 = vmatpush2.msra.mxu0 0.0
    %326 = vmatprep.subr.mxu0 0.0
    %327 = vmatpush2.msra.mxu0 0.0
    %328 = vmatprep.subr.mxu0 0.0
    %329 = vmatpush2.msra.mxu0 0.0
    %330 = vmatprep.subr.mxu0 0.0
    %331 = vmatpush2.msra.mxu0 0.0
    %332 = vmatprep.subr.mxu0 0.0
    %333 = vmatpush2.msra.mxu0 0.0
    %334 = vmatprep.subr.mxu0 0.0
    %335 = vmatpush2.msra.mxu0 0.0
    %336 = vmatprep.subr.mxu0 0.0
    %337 = vmatpush2.msra.mxu0 0.0
    %338 = vmatprep.subr.mxu0 0.0
    %339 = vmatpush2.msra.mxu0 0.0
    %340 = vmatprep.subr.mxu0 0.0
    %341 = vmatpush2.msra.mxu0 0.0
    %342 = vmatprep.mubr.f32.mxu0 0.0
    %343 = vmatmul.mubr.f32.gmra.mxu0 %v112
    %v344 = vpop.f32.mrf.mxu0
    %v345 = vadd.f32 %v207, %v344
    %v346 = vpop.f32.mrf.mxu0
    %347 = vdwg.mxu0
    %v348 = vmul.f32 %v184, %v275
    %v349 = vmul.f32 %v185, %v345
    %350 = vadd.xlane.f32.xlu0 %v348
    %v351 = vpop.xlane.xlu0 %350
    %352 = vadd.xlane.f32.xlu0 %v349
    %v353 = vpop.xlane.xlu0 %352
    %v354 = vrot.slane %v351, 4
    %v355 = vadd.f32 %v351, %v354
    %v356 = vrot.slane %v355, 2
    %v357 = vadd.f32 %v355, %v356
    %v358 = vrot.slane %v357, 1
    %v359 = vadd.f32 %v357, %v358
    %v360 = vrot.slane %v353, 4
    %v361 = vadd.f32 %v353, %v360
    %v362 = vrot.slane %v361, 2
    %v363 = vadd.f32 %v361, %v362
    %v364 = vrot.slane %v363, 1
    %v365 = vadd.f32 %v363, %v364
    %v366 = vand.u32 2147483647, %v359
    %v367 = vand.u32 2147483647, %v365
    %v368 = vadd.f32 %v366, 1e-10
    %v369 = vadd.f32 %v367, 1e-10
    %v370 = vrcp.pop %v368
    %v371 = vmul.f32 %v204, %v370
    %v372 = vrcp.pop %v369
    %v373 = vmul.f32 %v205, %v372
    %v374 = vmul.f32 %v371, %v184
    %v375 = vmul.f32 %v373, %v185
    %v376 = vadd.f32 %v33, %v374
    %v377 = vadd.f32 %v34, %v375
    %v378 = vmul.f32 %v371, %v275
    %v379 = vmul.f32 %v373, %v345
    %v380 = vsub.f32 %v184, %v378
    %v381 = vsub.f32 %v185, %v379
    %v382 = vmul.f32 %v380, %v380
    %v383 = vmul.f32 %v381, %v381
    %384 = vadd.xlane.f32.xlu0 %v382
    %v385 = vpop.xlane.xlu0 %384
    %386 = vadd.xlane.f32.xlu0 %v383
    %v387 = vpop.xlane.xlu0 %386
    %v388 = vrot.slane %v385, 4
    %v389 = vadd.f32 %v385, %v388
    %v390 = vrot.slane %v389, 2
    %v391 = vadd.f32 %v389, %v390
    %v392 = vrot.slane %v391, 1
    %v393 = vadd.f32 %v391, %v392
    %v394 = vrot.slane %v387, 4
    %v395 = vadd.f32 %v387, %v394
    %v396 = vrot.slane %v395, 2
    %v397 = vadd.f32 %v395, %v396
    %v398 = vrot.slane %v397, 1
    %v399 = vadd.f32 %v397, %v398
    %v400 = vand.u32 2147483647, %v393
    %v401 = vand.u32 2147483647, %v399
    %v402 = vadd.f32 %v400, 1e-10
    %v403 = vadd.f32 %v401, 1e-10
    %v404 = vrsqrt.pop %v402
    %v405 = vmul.f32 %v402, %v404
    %vm406 = vcmp.eq.f32.partialorder %v402, inf
    %v407 = vsel %vm406, %v402, %v405
    %vm408 = vcmp.eq.f32.partialorder %v402, 0.0
    %v409 = vand.u32 %v402, 2147483648
    %v410 = vsel %vm408, %v409, %v407
    %v411 = vrsqrt.pop %v403
    %v412 = vmul.f32 %v403, %v411
    %vm413 = vcmp.eq.f32.partialorder %v403, inf
    %v414 = vsel %vm413, %v403, %v412
    %vm415 = vcmp.eq.f32.partialorder %v403, 0.0
    %v416 = vand.u32 %v403, 2147483648
    %v417 = vsel %vm415, %v416, %v414
    %vm418 = vcmask 0
    %v419 = vsel %vm418, %v410, 0.0
    %v420 = vsel %vm418, %v417, 0.0
    %v421 = vadd.f32 %v419, %v420
    %422 = vadd.xlane.f32.xlu0 %v421
    %v423 = vpop.xlane.xlu0 %422
    %v424 = vrot.slane %v423, 4
    %v425 = vadd.f32 %v423, %v424
    %v426 = vrot.slane %v425, 2
    %v427 = vadd.f32 %v425, %v426
    %v428 = vrot.slane %v427, 1
    %v429 = vadd.f32 %v427, %v428
    %s430 = vtos %v429
    %v431 = vstv %s430
    %vm432 = vcmp.ge.f32.partialorder %v431, 1e-09
    %v433 = vsel %vm432, 1, 0
    %v434 = vcvt.s32.f32 %v433
    %v435 = vadd.f32 %v204, 1e-10
    %v436 = vadd.f32 %v205, 1e-10
    %v437 = vrcp.pop %v435
    %v438 = vmul.f32 %v400, %v437
    %v439 = vrcp.pop %v436
    %v440 = vmul.f32 %v401, %v439
    %vm441 = vcmp.gt.f32.partialorder %v434, 0.0
    %v442 = vsel %vm441, 1, 0
    %vm443 = vcmp.eq.s32.totalorder %v442, 1
    %v444 = vsel %vm443, %v438, 1.0
    %v445 = vsel %vm443, %v440, 1.0
    %v446 = vmul.f32 %v434, %v380
    %v447 = vmul.f32 %v434, %v381
    %v448 = vmul.f32 %v444, %v184
    %v449 = vmul.f32 %v445, %v185
    %v450 = vadd.f32 %v446, %v448
    %v451 = vadd.f32 %v447, %v449
    %v452 = vsel %vm443, %v400, %v204
    %v453 = vsel %vm443, %v401, %v205
    %v454 = vmul.f32 %v450, 0.05
    %v455 = vmul.f32 %v451, 0.05
    %456 = vmatprep.subr.mxu0 0.0
    %457 = vmatpush1.msra.mxu0 0.0
    %458 = vmatprep.subr.mxu0 0.0
    %459 = vmatpush1.msra.mxu0 0.0
    %460 = vmatprep.subr.mxu0 0.0
    %461 = vmatpush1.msra.mxu0 0.0
    %462 = vmatprep.subr.mxu0 0.0
    %463 = vmatpush1.msra.mxu0 0.0
    %464 = vmatprep.subr.mxu0 0.0
    %465 = vmatpush1.msra.mxu0 0.0
    %466 = vmatprep.subr.mxu0 0.0
    %467 = vmatpush1.msra.mxu0 0.0
    %468 = vmatprep.subr.mxu0 0.0
    %469 = vmatpush1.msra.mxu0 0.0
    %470 = vmatprep.subr.mxu0 0.0
    %471 = vmatpush1.msra.mxu0 0.0
    %472 = vmatprep.subr.mxu0 0.0
    %473 = vmatpush1.msra.mxu0 0.0
    %474 = vmatprep.subr.mxu0 0.0
    %475 = vmatpush1.msra.mxu0 0.0
    %476 = vmatprep.subr.mxu0 0.0
    %477 = vmatpush1.msra.mxu0 0.0
    %478 = vmatprep.subr.mxu0 0.0
    %479 = vmatpush1.msra.mxu0 0.0
    %480 = vmatprep.subr.mxu0 0.0
    %481 = vmatpush1.msra.mxu0 0.0
    %482 = vmatprep.subr.mxu0 0.0
    %483 = vmatpush1.msra.mxu0 0.0
    %484 = vmatprep.subr.mxu0 0.0
    %485 = vmatpush1.msra.mxu0 0.0
    %486 = vmatprep.subr.mxu0 0.0
    %487 = vmatpush1.msra.mxu0 %v450
    %488 = vmatprep.subr.mxu0 0.0
    %489 = vmatpush2.msra.mxu0 0.0
    %490 = vmatprep.subr.mxu0 0.0
    %491 = vmatpush2.msra.mxu0 0.0
    %492 = vmatprep.subr.mxu0 0.0
    %493 = vmatpush2.msra.mxu0 0.0
    %494 = vmatprep.subr.mxu0 0.0
    %495 = vmatpush2.msra.mxu0 0.0
    %496 = vmatprep.subr.mxu0 0.0
    %497 = vmatpush2.msra.mxu0 0.0
    %498 = vmatprep.subr.mxu0 0.0
    %499 = vmatpush2.msra.mxu0 0.0
    %500 = vmatprep.subr.mxu0 0.0
    %501 = vmatpush2.msra.mxu0 0.0
    %502 = vmatprep.subr.mxu0 0.0
    %503 = vmatpush2.msra.mxu0 0.0
    %504 = vmatprep.subr.mxu0 0.0
    %505 = vmatpush2.msra.mxu0 0.0
    %506 = vmatprep.subr.mxu0 0.0
    %507 = vmatpush2.msra.mxu0 0.0
    %508 = vmatprep.subr.mxu0 0.0
    %509 = vmatpush2.msra.mxu0 0.0
    %510 = vmatprep.subr.mxu0 0.0
    %511 = vmatpush2.msra.mxu0 0.0
    %512 = vmatprep.subr.mxu0 0.0
    %513 = vmatpush2.msra.mxu0 0.0
    %514 = vmatprep.subr.mxu0 0.0
    %515 = vmatpush2.msra.mxu0 0.0
    %516 = vmatprep.subr.mxu0 0.0
    %517 = vmatpush2.msra.mxu0 0.0
    %518 = vmatprep.subr.mxu0 0.0
    %519 = vmatpush2.msra.mxu0 0.0
    %520 = vmatprep.mubr.f32.mxu0 0.0
    %521 = vmatmul.mubr.f32.gmra.mxu0 %v39
    %v522 = vpop.f32.mrf.mxu0
    %v523 = vadd.f32 %v454, %v522
    %v524 = vpop.f32.mrf.mxu0
    %525 = vdwg.mxu0
    %526 = vmatprep.subr.mxu0 0.0
    %527 = vmatpush1.msra.mxu0 0.0
    %528 = vmatprep.subr.mxu0 0.0
    %529 = vmatpush1.msra.mxu0 0.0
    %530 = vmatprep.subr.mxu0 0.0
    %531 = vmatpush1.msra.mxu0 0.0
    %532 = vmatprep.subr.mxu0 0.0
    %533 = vmatpush1.msra.mxu0 0.0
    %534 = vmatprep.subr.mxu0 0.0
    %535 = vmatpush1.msra.mxu0 0.0
    %536 = vmatprep.subr.mxu0 0.0
    %537 = vmatpush1.msra.mxu0 0.0
    %538 = vmatprep.subr.mxu0 0.0
    %539 = vmatpush1.msra.mxu0 0.0
    %540 = vmatprep.subr.mxu0 0.0
    %541 = vmatpush1.msra.mxu0 0.0
    %542 = vmatprep.subr.mxu0 0.0
    %543 = vmatpush1.msra.mxu0 0.0
    %544 = vmatprep.subr.mxu0 0.0
    %545 = vmatpush1.msra.mxu0 0.0
    %546 = vmatprep.subr.mxu0 0.0
    %547 = vmatpush1.msra.mxu0 0.0
    %548 = vmatprep.subr.mxu0 0.0
    %549 = vmatpush1.msra.mxu0 0.0
    %550 = vmatprep.subr.mxu0 0.0
    %551 = vmatpush1.msra.mxu0 0.0
    %552 = vmatprep.subr.mxu0 0.0
    %553 = vmatpush1.msra.mxu0 0.0
    %554 = vmatprep.subr.mxu0 0.0
    %555 = vmatpush1.msra.mxu0 0.0
    %556 = vmatprep.subr.mxu0 0.0
    %557 = vmatpush1.msra.mxu0 %v451
    %558 = vmatprep.subr.mxu0 0.0
    %559 = vmatpush2.msra.mxu0 0.0
    %560 = vmatprep.subr.mxu0 0.0
    %561 = vmatpush2.msra.mxu0 0.0
    %562 = vmatprep.subr.mxu0 0.0
    %563 = vmatpush2.msra.mxu0 0.0
    %564 = vmatprep.subr.mxu0 0.0
    %565 = vmatpush2.msra.mxu0 0.0
    %566 = vmatprep.subr.mxu0 0.0
    %567 = vmatpush2.msra.mxu0 0.0
    %568 = vmatprep.subr.mxu0 0.0
    %569 = vmatpush2.msra.mxu0 0.0
    %570 = vmatprep.subr.mxu0 0.0
    %571 = vmatpush2.msra.mxu0 0.0
    %572 = vmatprep.subr.mxu0 0.0
    %573 = vmatpush2.msra.mxu0 0.0
    %574 = vmatprep.subr.mxu0 0.0
    %575 = vmatpush2.msra.mxu0 0.0
    %576 = vmatprep.subr.mxu0 0.0
    %577 = vmatpush2.msra.mxu0 0.0
    %578 = vmatprep.subr.mxu0 0.0
    %579 = vmatpush2.msra.mxu0 0.0
    %580 = vmatprep.subr.mxu0 0.0
    %581 = vmatpush2.msra.mxu0 0.0
    %582 = vmatprep.subr.mxu0 0.0
    %583 = vmatpush2.msra.mxu0 0.0
    %584 = vmatprep.subr.mxu0 0.0
    %585 = vmatpush2.msra.mxu0 0.0
    %586 = vmatprep.subr.mxu0 0.0
    %587 = vmatpush2.msra.mxu0 0.0
    %588 = vmatprep.subr.mxu0 0.0
    %589 = vmatpush2.msra.mxu0 0.0
    %590 = vmatprep.mubr.f32.mxu0 0.0
    %591 = vmatmul.mubr.f32.gmra.mxu0 %v112
    %v592 = vpop.f32.mrf.mxu0
    %v593 = vadd.f32 %v455, %v592
    %v594 = vpop.f32.mrf.mxu0
    %595 = vdwg.mxu0
    %v596 = vmul.f32 %v450, %v523
    %v597 = vmul.f32 %v451, %v593
    %598 = vadd.xlane.f32.xlu0 %v596
    %v599 = vpop.xlane.xlu0 %598
    %600 = vadd.xlane.f32.xlu0 %v597
    %v601 = vpop.xlane.xlu0 %600
    %v602 = vrot.slane %v599, 4
    %v603 = vadd.f32 %v599, %v602
    %v604 = vrot.slane %v603, 2
    %v605 = vadd.f32 %v603, %v604
    %v606 = vrot.slane %v605, 1
    %v607 = vadd.f32 %v605, %v606
    %v608 = vrot.slane %v601, 4
    %v609 = vadd.f32 %v601, %v608
    %v610 = vrot.slane %v609, 2
    %v611 = vadd.f32 %v609, %v610
    %v612 = vrot.slane %v611, 1
    %v613 = vadd.f32 %v611, %v612
    %v614 = vand.u32 2147483647, %v607
    %v615 = vand.u32 2147483647, %v613
    %v616 = vadd.f32 %v614, 1e-10
    %v617 = vadd.f32 %v615, 1e-10
    %v618 = vrcp.pop %v616
    %v619 = vmul.f32 %v452, %v618
    %v620 = vrcp.pop %v617
    %v621 = vmul.f32 %v453, %v620
    %v622 = vmul.f32 %v619, %v434
    %v623 = vmul.f32 %v621, %v434
    %v624 = vmul.f32 %v622, %v450
    %v625 = vmul.f32 %v623, %v451
    %v626 = vadd.f32 %v376, %v624
    %v627 = vadd.f32 %v377, %v625
    %v628 = vmul.f32 %v622, %v523
    %v629 = vmul.f32 %v623, %v593
    %v630 = vsub.f32 %v380, %v628
    %v631 = vsub.f32 %v381, %v629
    %v632 = vmul.f32 %v630, %v630
    %v633 = vmul.f32 %v631, %v631
    %634 = vadd.xlane.f32.xlu0 %v632
    %v635 = vpop.xlane.xlu0 %634
    %636 = vadd.xlane.f32.xlu0 %v633
    %v637 = vpop.xlane.xlu0 %636
    %v638 = vrot.slane %v635, 4
    %v639 = vadd.f32 %v635, %v638
    %v640 = vrot.slane %v639, 2
    %v641 = vadd.f32 %v639, %v640
    %v642 = vrot.slane %v641, 1
    %v643 = vadd.f32 %v641, %v642
    %v644 = vrot.slane %v637, 4
    %v645 = vadd.f32 %v637, %v644
    %v646 = vrot.slane %v645, 2
    %v647 = vadd.f32 %v645, %v646
    %v648 = vrot.slane %v647, 1
    %v649 = vadd.f32 %v647, %v648
    %v650 = vand.u32 2147483647, %v643
    %v651 = vand.u32 2147483647, %v649
    %v652 = vadd.f32 %v650, 1e-10
    %v653 = vadd.f32 %v651, 1e-10
    %v654 = vrsqrt.pop %v652
    %v655 = vmul.f32 %v652, %v654
    %vm656 = vcmp.eq.f32.partialorder %v652, inf
    %v657 = vsel %vm656, %v652, %v655
    %vm658 = vcmp.eq.f32.partialorder %v652, 0.0
    %v659 = vand.u32 %v652, 2147483648
    %v660 = vsel %vm658, %v659, %v657
    %v661 = vrsqrt.pop %v653
    %v662 = vmul.f32 %v653, %v661
    %vm663 = vcmp.eq.f32.partialorder %v653, inf
    %v664 = vsel %vm663, %v653, %v662
    %vm665 = vcmp.eq.f32.partialorder %v653, 0.0
    %v666 = vand.u32 %v653, 2147483648
    %v667 = vsel %vm665, %v666, %v664
    %v668 = vsel %vm418, %v660, 0.0
    %v669 = vsel %vm418, %v667, 0.0
    %v670 = vadd.f32 %v668, %v669
    %671 = vadd.xlane.f32.xlu0 %v670
    %v672 = vpop.xlane.xlu0 %671
    %v673 = vrot.slane %v672, 4
    %v674 = vadd.f32 %v672, %v673
    %v675 = vrot.slane %v674, 2
    %v676 = vadd.f32 %v674, %v675
    %v677 = vrot.slane %v676, 1
    %v678 = vadd.f32 %v676, %v677
    %s679 = vtos %v678
    %v680 = vstv %s679
    %vm681 = vcmp.ge.f32.partialorder %v680, 1e-09
    %v682 = vsel %vm681, 1, 0
    %v683 = vcvt.s32.f32 %v682
    %v684 = vmul.f32 %v434, %v683
    %v685 = vadd.f32 %v452, 1e-10
    %v686 = vadd.f32 %v453, 1e-10
    %v687 = vrcp.pop %v685
    %v688 = vmul.f32 %v650, %v687
    %v689 = vrcp.pop %v686
    %v690 = vmul.f32 %v651, %v689
    %vm691 = vcmp.gt.f32.partialorder %v684, 0.0
    %v692 = vsel %vm691, 1, 0
    %vm693 = vcmp.eq.s32.totalorder %v692, 1
    %v694 = vsel %vm693, %v688, 1.0
    %v695 = vsel %vm693, %v690, 1.0
    %v696 = vmul.f32 %v684, %v630
    %v697 = vmul.f32 %v684, %v631
    %v698 = vmul.f32 %v694, %v450
    %v699 = vmul.f32 %v695, %v451
    %v700 = vadd.f32 %v696, %v698
    %v701 = vadd.f32 %v697, %v699
    %v702 = vsel %vm693, %v650, %v452
    %v703 = vsel %vm693, %v651, %v453
    %v704 = vmul.f32 %v700, 0.05
    %v705 = vmul.f32 %v701, 0.05
    %706 = vmatprep.subr.mxu0 0.0
    %707 = vmatpush1.msra.mxu0 0.0
    %708 = vmatprep.subr.mxu0 0.0
    %709 = vmatpush1.msra.mxu0 0.0
    %710 = vmatprep.subr.mxu0 0.0
    %711 = vmatpush1.msra.mxu0 0.0
    %712 = vmatprep.subr.mxu0 0.0
    %713 = vmatpush1.msra.mxu0 0.0
    %714 = vmatprep.subr.mxu0 0.0
    %715 = vmatpush1.msra.mxu0 0.0
    %716 = vmatprep.subr.mxu0 0.0
    %717 = vmatpush1.msra.mxu0 0.0
    %718 = vmatprep.subr.mxu0 0.0
    %719 = vmatpush1.msra.mxu0 0.0
    %720 = vmatprep.subr.mxu0 0.0
    %721 = vmatpush1.msra.mxu0 0.0
    %722 = vmatprep.subr.mxu0 0.0
    %723 = vmatpush1.msra.mxu0 0.0
    %724 = vmatprep.subr.mxu0 0.0
    %725 = vmatpush1.msra.mxu0 0.0
    %726 = vmatprep.subr.mxu0 0.0
    %727 = vmatpush1.msra.mxu0 0.0
    %728 = vmatprep.subr.mxu0 0.0
    %729 = vmatpush1.msra.mxu0 0.0
    %730 = vmatprep.subr.mxu0 0.0
    %731 = vmatpush1.msra.mxu0 0.0
    %732 = vmatprep.subr.mxu0 0.0
    %733 = vmatpush1.msra.mxu0 0.0
    %734 = vmatprep.subr.mxu0 0.0
    %735 = vmatpush1.msra.mxu0 0.0
    %736 = vmatprep.subr.mxu0 0.0
    %737 = vmatpush1.msra.mxu0 %v700
    %738 = vmatprep.subr.mxu0 0.0
    %739 = vmatpush2.msra.mxu0 0.0
    %740 = vmatprep.subr.mxu0 0.0
    %741 = vmatpush2.msra.mxu0 0.0
    %742 = vmatprep.subr.mxu0 0.0
    %743 = vmatpush2.msra.mxu0 0.0
    %744 = vmatprep.subr.mxu0 0.0
    %745 = vmatpush2.msra.mxu0 0.0
    %746 = vmatprep.subr.mxu0 0.0
    %747 = vmatpush2.msra.mxu0 0.0
    %748 = vmatprep.subr.mxu0 0.0
    %749 = vmatpush2.msra.mxu0 0.0
    %750 = vmatprep.subr.mxu0 0.0
    %751 = vmatpush2.msra.mxu0 0.0
    %752 = vmatprep.subr.mxu0 0.0
    %753 = vmatpush2.msra.mxu0 0.0
    %754 = vmatprep.subr.mxu0 0.0
    %755 = vmatpush2.msra.mxu0 0.0
    %756 = vmatprep.subr.mxu0 0.0
    %757 = vmatpush2.msra.mxu0 0.0
    %758 = vmatprep.subr.mxu0 0.0
    %759 = vmatpush2.msra.mxu0 0.0
    %760 = vmatprep.subr.mxu0 0.0
    %761 = vmatpush2.msra.mxu0 0.0
    %762 = vmatprep.subr.mxu0 0.0
    %763 = vmatpush2.msra.mxu0 0.0
    %764 = vmatprep.subr.mxu0 0.0
    %765 = vmatpush2.msra.mxu0 0.0
    %766 = vmatprep.subr.mxu0 0.0
    %767 = vmatpush2.msra.mxu0 0.0
    %768 = vmatprep.subr.mxu0 0.0
    %769 = vmatpush2.msra.mxu0 0.0
    %770 = vmatprep.mubr.f32.mxu0 0.0
    %771 = vmatmul.mubr.f32.gmra.mxu0 %v39
    %v772 = vpop.f32.mrf.mxu0
    %v773 = vadd.f32 %v704, %v772
    %v774 = vpop.f32.mrf.mxu0
    %775 = vdwg.mxu0
    %776 = vmatprep.subr.mxu0 0.0
    %777 = vmatpush1.msra.mxu0 0.0
    %778 = vmatprep.subr.mxu0 0.0
    %779 = vmatpush1.msra.mxu0 0.0
    %780 = vmatprep.subr.mxu0 0.0
    %781 = vmatpush1.msra.mxu0 0.0
    %782 = vmatprep.subr.mxu0 0.0
    %783 = vmatpush1.msra.mxu0 0.0
    %784 = vmatprep.subr.mxu0 0.0
    %785 = vmatpush1.msra.mxu0 0.0
    %786 = vmatprep.subr.mxu0 0.0
    %787 = vmatpush1.msra.mxu0 0.0
    %788 = vmatprep.subr.mxu0 0.0
    %789 = vmatpush1.msra.mxu0 0.0
    %790 = vmatprep.subr.mxu0 0.0
    %791 = vmatpush1.msra.mxu0 0.0
    %792 = vmatprep.subr.mxu0 0.0
    %793 = vmatpush1.msra.mxu0 0.0
    %794 = vmatprep.subr.mxu0 0.0
    %795 = vmatpush1.msra.mxu0 0.0
    %796 = vmatprep.subr.mxu0 0.0
    %797 = vmatpush1.msra.mxu0 0.0
    %798 = vmatprep.subr.mxu0 0.0
    %799 = vmatpush1.msra.mxu0 0.0
    %800 = vmatprep.subr.mxu0 0.0
    %801 = vmatpush1.msra.mxu0 0.0
    %802 = vmatprep.subr.mxu0 0.0
    %803 = vmatpush1.msra.mxu0 0.0
    %804 = vmatprep.subr.mxu0 0.0
    %805 = vmatpush1.msra.mxu0 0.0
    %806 = vmatprep.subr.mxu0 0.0
    %807 = vmatpush1.msra.mxu0 %v701
    %808 = vmatprep.subr.mxu0 0.0
    %809 = vmatpush2.msra.mxu0 0.0
    %810 = vmatprep.subr.mxu0 0.0
    %811 = vmatpush2.msra.mxu0 0.0
    %812 = vmatprep.subr.mxu0 0.0
    %813 = vmatpush2.msra.mxu0 0.0
    %814 = vmatprep.subr.mxu0 0.0
    %815 = vmatpush2.msra.mxu0 0.0
    %816 = vmatprep.subr.mxu0 0.0
    %817 = vmatpush2.msra.mxu0 0.0
    %818 = vmatprep.subr.mxu0 0.0
    %819 = vmatpush2.msra.mxu0 0.0
    %820 = vmatprep.subr.mxu0 0.0
    %821 = vmatpush2.msra.mxu0 0.0
    %822 = vmatprep.subr.mxu0 0.0
    %823 = vmatpush2.msra.mxu0 0.0
    %824 = vmatprep.subr.mxu0 0.0
    %825 = vmatpush2.msra.mxu0 0.0
    %826 = vmatprep.subr.mxu0 0.0
    %827 = vmatpush2.msra.mxu0 0.0
    %828 = vmatprep.subr.mxu0 0.0
    %829 = vmatpush2.msra.mxu0 0.0
    %830 = vmatprep.subr.mxu0 0.0
    %831 = vmatpush2.msra.mxu0 0.0
    %832 = vmatprep.subr.mxu0 0.0
    %833 = vmatpush2.msra.mxu0 0.0
    %834 = vmatprep.subr.mxu0 0.0
    %835 = vmatpush2.msra.mxu0 0.0
    %836 = vmatprep.subr.mxu0 0.0
    %837 = vmatpush2.msra.mxu0 0.0
    %838 = vmatprep.subr.mxu0 0.0
    %839 = vmatpush2.msra.mxu0 0.0
    %840 = vmatprep.mubr.f32.mxu0 0.0
    %841 = vmatmul.mubr.f32.gmra.mxu0 %v112
    %v842 = vpop.f32.mrf.mxu0
    %v843 = vadd.f32 %v705, %v842
    %v844 = vpop.f32.mrf.mxu0
    %845 = vdwg.mxu0
    %v846 = vmul.f32 %v700, %v773
    %v847 = vmul.f32 %v701, %v843
    %848 = vadd.xlane.f32.xlu0 %v846
    %v849 = vpop.xlane.xlu0 %848
    %850 = vadd.xlane.f32.xlu0 %v847
    %v851 = vpop.xlane.xlu0 %850
    %v852 = vrot.slane %v849, 4
    %v853 = vadd.f32 %v849, %v852
    %v854 = vrot.slane %v853, 2
    %v855 = vadd.f32 %v853, %v854
    %v856 = vrot.slane %v855, 1
    %v857 = vadd.f32 %v855, %v856
    %v858 = vrot.slane %v851, 4
    %v859 = vadd.f32 %v851, %v858
    %v860 = vrot.slane %v859, 2
    %v861 = vadd.f32 %v859, %v860
    %v862 = vrot.slane %v861, 1
    %v863 = vadd.f32 %v861, %v862
    %v864 = vand.u32 2147483647, %v857
    %v865 = vand.u32 2147483647, %v863
    %v866 = vadd.f32 %v864, 1e-10
    %v867 = vadd.f32 %v865, 1e-10
    %v868 = vrcp.pop %v866
    %v869 = vmul.f32 %v702, %v868
    %v870 = vrcp.pop %v867
    %v871 = vmul.f32 %v703, %v870
    %v872 = vmul.f32 %v869, %v684
    %v873 = vmul.f32 %v871, %v684
    %v874 = vmul.f32 %v872, %v700
    %v875 = vmul.f32 %v873, %v701
    %v876 = vadd.f32 %v626, %v874
    %v877 = vadd.f32 %v627, %v875
    %v878 = vmul.f32 %v872, %v773
    %v879 = vmul.f32 %v873, %v843
    %v880 = vsub.f32 %v630, %v878
    %v881 = vsub.f32 %v631, %v879
    %v882 = vmul.f32 %v880, %v880
    %v883 = vmul.f32 %v881, %v881
    %884 = vadd.xlane.f32.xlu0 %v882
    %v885 = vpop.xlane.xlu0 %884
    %886 = vadd.xlane.f32.xlu0 %v883
    %v887 = vpop.xlane.xlu0 %886
    %v888 = vrot.slane %v885, 4
    %v889 = vadd.f32 %v885, %v888
    %v890 = vrot.slane %v889, 2
    %v891 = vadd.f32 %v889, %v890
    %v892 = vrot.slane %v891, 1
    %v893 = vadd.f32 %v891, %v892
    %v894 = vrot.slane %v887, 4
    %v895 = vadd.f32 %v887, %v894
    %v896 = vrot.slane %v895, 2
    %v897 = vadd.f32 %v895, %v896
    %v898 = vrot.slane %v897, 1
    %v899 = vadd.f32 %v897, %v898
    %v900 = vand.u32 2147483647, %v893
    %v901 = vand.u32 2147483647, %v899
    %v902 = vadd.f32 %v900, 1e-10
    %v903 = vadd.f32 %v901, 1e-10
    %v904 = vrsqrt.pop %v902
    %v905 = vmul.f32 %v902, %v904
    %vm906 = vcmp.eq.f32.partialorder %v902, inf
    %v907 = vsel %vm906, %v902, %v905
    %vm908 = vcmp.eq.f32.partialorder %v902, 0.0
    %v909 = vand.u32 %v902, 2147483648
    %v910 = vsel %vm908, %v909, %v907
    %v911 = vrsqrt.pop %v903
    %v912 = vmul.f32 %v903, %v911
    %vm913 = vcmp.eq.f32.partialorder %v903, inf
    %v914 = vsel %vm913, %v903, %v912
    %vm915 = vcmp.eq.f32.partialorder %v903, 0.0
    %v916 = vand.u32 %v903, 2147483648
    %v917 = vsel %vm915, %v916, %v914
    %v918 = vsel %vm418, %v910, 0.0
    %v919 = vsel %vm418, %v917, 0.0
    %v920 = vadd.f32 %v918, %v919
    %921 = vadd.xlane.f32.xlu0 %v920
    %v922 = vpop.xlane.xlu0 %921
    %v923 = vrot.slane %v922, 4
    %v924 = vadd.f32 %v922, %v923
    %v925 = vrot.slane %v924, 2
    %v926 = vadd.f32 %v924, %v925
    %v927 = vrot.slane %v926, 1
    %v928 = vadd.f32 %v926, %v927
    %s929 = vtos %v928
    %v930 = vstv %s929
    %vm931 = vcmp.ge.f32.partialorder %v930, 1e-09
    %v932 = vsel %vm931, 1, 0
    %v933 = vcvt.s32.f32 %v932
    %v934 = vmul.f32 %v684, %v933
    %v935 = vadd.f32 %v702, 1e-10
    %v936 = vadd.f32 %v703, 1e-10
    %v937 = vrcp.pop %v935
    %v938 = vmul.f32 %v900, %v937
    %v939 = vrcp.pop %v936
    %v940 = vmul.f32 %v901, %v939
    %vm941 = vcmp.gt.f32.partialorder %v934, 0.0
    %v942 = vsel %vm941, 1, 0
    %vm943 = vcmp.eq.s32.totalorder %v942, 1
    %v944 = vsel %vm943, %v938, 1.0
    %v945 = vsel %vm943, %v940, 1.0
    %v946 = vmul.f32 %v934, %v880
    %v947 = vmul.f32 %v934, %v881
    %v948 = vmul.f32 %v944, %v700
    %v949 = vmul.f32 %v945, %v701
    %v950 = vadd.f32 %v946, %v948
    %v951 = vadd.f32 %v947, %v949
    %v952 = vsel %vm943, %v900, %v702
    %v953 = vsel %vm943, %v901, %v703
    %v954 = vmul.f32 %v950, 0.05
    %v955 = vmul.f32 %v951, 0.05
    %956 = vmatprep.subr.mxu0 0.0
    %957 = vmatpush1.msra.mxu0 0.0
    %958 = vmatprep.subr.mxu0 0.0
    %959 = vmatpush1.msra.mxu0 0.0
    %960 = vmatprep.subr.mxu0 0.0
    %961 = vmatpush1.msra.mxu0 0.0
    %962 = vmatprep.subr.mxu0 0.0
    %963 = vmatpush1.msra.mxu0 0.0
    %964 = vmatprep.subr.mxu0 0.0
    %965 = vmatpush1.msra.mxu0 0.0
    %966 = vmatprep.subr.mxu0 0.0
    %967 = vmatpush1.msra.mxu0 0.0
    %968 = vmatprep.subr.mxu0 0.0
    %969 = vmatpush1.msra.mxu0 0.0
    %970 = vmatprep.subr.mxu0 0.0
    %971 = vmatpush1.msra.mxu0 0.0
    %972 = vmatprep.subr.mxu0 0.0
    %973 = vmatpush1.msra.mxu0 0.0
    %974 = vmatprep.subr.mxu0 0.0
    %975 = vmatpush1.msra.mxu0 0.0
    %976 = vmatprep.subr.mxu0 0.0
    %977 = vmatpush1.msra.mxu0 0.0
    %978 = vmatprep.subr.mxu0 0.0
    %979 = vmatpush1.msra.mxu0 0.0
    %980 = vmatprep.subr.mxu0 0.0
    %981 = vmatpush1.msra.mxu0 0.0
    %982 = vmatprep.subr.mxu0 0.0
    %983 = vmatpush1.msra.mxu0 0.0
    %984 = vmatprep.subr.mxu0 0.0
    %985 = vmatpush1.msra.mxu0 0.0
    %986 = vmatprep.subr.mxu0 0.0
    %987 = vmatpush1.msra.mxu0 %v950
    %988 = vmatprep.subr.mxu0 0.0
    %989 = vmatpush2.msra.mxu0 0.0
    %990 = vmatprep.subr.mxu0 0.0
    %991 = vmatpush2.msra.mxu0 0.0
    %992 = vmatprep.subr.mxu0 0.0
    %993 = vmatpush2.msra.mxu0 0.0
    %994 = vmatprep.subr.mxu0 0.0
    %995 = vmatpush2.msra.mxu0 0.0
    %996 = vmatprep.subr.mxu0 0.0
    %997 = vmatpush2.msra.mxu0 0.0
    %998 = vmatprep.subr.mxu0 0.0
    %999 = vmatpush2.msra.mxu0 0.0
    %1000 = vmatprep.subr.mxu0 0.0
    %1001 = vmatpush2.msra.mxu0 0.0
    %1002 = vmatprep.subr.mxu0 0.0
    %1003 = vmatpush2.msra.mxu0 0.0
    %1004 = vmatprep.subr.mxu0 0.0
    %1005 = vmatpush2.msra.mxu0 0.0
    %1006 = vmatprep.subr.mxu0 0.0
    %1007 = vmatpush2.msra.mxu0 0.0
    %1008 = vmatprep.subr.mxu0 0.0
    %1009 = vmatpush2.msra.mxu0 0.0
    %1010 = vmatprep.subr.mxu0 0.0
    %1011 = vmatpush2.msra.mxu0 0.0
    %1012 = vmatprep.subr.mxu0 0.0
    %1013 = vmatpush2.msra.mxu0 0.0
    %1014 = vmatprep.subr.mxu0 0.0
    %1015 = vmatpush2.msra.mxu0 0.0
    %1016 = vmatprep.subr.mxu0 0.0
    %1017 = vmatpush2.msra.mxu0 0.0
    %1018 = vmatprep.subr.mxu0 0.0
    %1019 = vmatpush2.msra.mxu0 0.0
    %1020 = vmatprep.mubr.f32.mxu0 0.0
    %1021 = vmatmul.mubr.f32.gmra.mxu0 %v39
    %v1022 = vpop.f32.mrf.mxu0
    %v1023 = vadd.f32 %v954, %v1022
    %v1024 = vpop.f32.mrf.mxu0
    %1025 = vdwg.mxu0
    %1026 = vmatprep.subr.mxu0 0.0
    %1027 = vmatpush1.msra.mxu0 0.0
    %1028 = vmatprep.subr.mxu0 0.0
    %1029 = vmatpush1.msra.mxu0 0.0
    %1030 = vmatprep.subr.mxu0 0.0
    %1031 = vmatpush1.msra.mxu0 0.0
    %1032 = vmatprep.subr.mxu0 0.0
    %1033 = vmatpush1.msra.mxu0 0.0
    %1034 = vmatprep.subr.mxu0 0.0
    %1035 = vmatpush1.msra.mxu0 0.0
    %1036 = vmatprep.subr.mxu0 0.0
    %1037 = vmatpush1.msra.mxu0 0.0
    %1038 = vmatprep.subr.mxu0 0.0
    %1039 = vmatpush1.msra.mxu0 0.0
    %1040 = vmatprep.subr.mxu0 0.0
    %1041 = vmatpush1.msra.mxu0 0.0
    %1042 = vmatprep.subr.mxu0 0.0
    %1043 = vmatpush1.msra.mxu0 0.0
    %1044 = vmatprep.subr.mxu0 0.0
    %1045 = vmatpush1.msra.mxu0 0.0
    %1046 = vmatprep.subr.mxu0 0.0
    %1047 = vmatpush1.msra.mxu0 0.0
    %1048 = vmatprep.subr.mxu0 0.0
    %1049 = vmatpush1.msra.mxu0 0.0
    %1050 = vmatprep.subr.mxu0 0.0
    %1051 = vmatpush1.msra.mxu0 0.0
    %1052 = vmatprep.subr.mxu0 0.0
    %1053 = vmatpush1.msra.mxu0 0.0
    %1054 = vmatprep.subr.mxu0 0.0
    %1055 = vmatpush1.msra.mxu0 0.0
    %1056 = vmatprep.subr.mxu0 0.0
    %1057 = vmatpush1.msra.mxu0 %v951
    %1058 = vmatprep.subr.mxu0 0.0
    %1059 = vmatpush2.msra.mxu0 0.0
    %1060 = vmatprep.subr.mxu0 0.0
    %1061 = vmatpush2.msra.mxu0 0.0
    %1062 = vmatprep.subr.mxu0 0.0
    %1063 = vmatpush2.msra.mxu0 0.0
    %1064 = vmatprep.subr.mxu0 0.0
    %1065 = vmatpush2.msra.mxu0 0.0
    %1066 = vmatprep.subr.mxu0 0.0
    %1067 = vmatpush2.msra.mxu0 0.0
    %1068 = vmatprep.subr.mxu0 0.0
    %1069 = vmatpush2.msra.mxu0 0.0
    %1070 = vmatprep.subr.mxu0 0.0
    %1071 = vmatpush2.msra.mxu0 0.0
    %1072 = vmatprep.subr.mxu0 0.0
    %1073 = vmatpush2.msra.mxu0 0.0
    %1074 = vmatprep.subr.mxu0 0.0
    %1075 = vmatpush2.msra.mxu0 0.0
    %1076 = vmatprep.subr.mxu0 0.0
    %1077 = vmatpush2.msra.mxu0 0.0
    %1078 = vmatprep.subr.mxu0 0.0
    %1079 = vmatpush2.msra.mxu0 0.0
    %1080 = vmatprep.subr.mxu0 0.0
    %1081 = vmatpush2.msra.mxu0 0.0
    %1082 = vmatprep.subr.mxu0 0.0
    %1083 = vmatpush2.msra.mxu0 0.0
    %1084 = vmatprep.subr.mxu0 0.0
    %1085 = vmatpush2.msra.mxu0 0.0
    %1086 = vmatprep.subr.mxu0 0.0
    %1087 = vmatpush2.msra.mxu0 0.0
    %1088 = vmatprep.subr.mxu0 0.0
    %1089 = vmatpush2.msra.mxu0 0.0
    %1090 = vmatprep.mubr.f32.mxu0 0.0
    %1091 = vmatmul.mubr.f32.gmra.mxu0 %v112
    %v1092 = vpop.f32.mrf.mxu0
    %v1093 = vadd.f32 %v955, %v1092
    %v1094 = vpop.f32.mrf.mxu0
    %1095 = vdwg.mxu0
    %v1096 = vmul.f32 %v950, %v1023
    %v1097 = vmul.f32 %v951, %v1093
    %1098 = vadd.xlane.f32.xlu0 %v1096
    %v1099 = vpop.xlane.xlu0 %1098
    %1100 = vadd.xlane.f32.xlu0 %v1097
    %v1101 = vpop.xlane.xlu0 %1100
    %v1102 = vrot.slane %v1099, 4
    %v1103 = vadd.f32 %v1099, %v1102
    %v1104 = vrot.slane %v1103, 2
    %v1105 = vadd.f32 %v1103, %v1104
    %v1106 = vrot.slane %v1105, 1
    %v1107 = vadd.f32 %v1105, %v1106
    %v1108 = vrot.slane %v1101, 4
    %v1109 = vadd.f32 %v1101, %v1108
    %v1110 = vrot.slane %v1109, 2
    %v1111 = vadd.f32 %v1109, %v1110
    %v1112 = vrot.slane %v1111, 1
    %v1113 = vadd.f32 %v1111, %v1112
    %v1114 = vand.u32 2147483647, %v1107
    %v1115 = vand.u32 2147483647, %v1113
    %v1116 = vadd.f32 %v1114, 1e-10
    %v1117 = vadd.f32 %v1115, 1e-10
    %v1118 = vrcp.pop %v1116
    %v1119 = vmul.f32 %v952, %v1118
    %v1120 = vrcp.pop %v1117
    %v1121 = vmul.f32 %v953, %v1120
    %v1122 = vmul.f32 %v1119, %v934
    %v1123 = vmul.f32 %v1121, %v934
    %v1124 = vmul.f32 %v1122, %v950
    %v1125 = vmul.f32 %v1123, %v951
    %v1126 = vadd.f32 %v876, %v1124
    %v1127 = vadd.f32 %v877, %v1125
    %v1128 = vmul.f32 %v1122, %v1023
    %v1129 = vmul.f32 %v1123, %v1093
    %v1130 = vsub.f32 %v880, %v1128
    %v1131 = vsub.f32 %v881, %v1129
    %v1132 = vmul.f32 %v1130, %v1130
    %v1133 = vmul.f32 %v1131, %v1131
    %1134 = vadd.xlane.f32.xlu0 %v1132
    %v1135 = vpop.xlane.xlu0 %1134
    %1136 = vadd.xlane.f32.xlu0 %v1133
    %v1137 = vpop.xlane.xlu0 %1136
    %v1138 = vrot.slane %v1135, 4
    %v1139 = vadd.f32 %v1135, %v1138
    %v1140 = vrot.slane %v1139, 2
    %v1141 = vadd.f32 %v1139, %v1140
    %v1142 = vrot.slane %v1141, 1
    %v1143 = vadd.f32 %v1141, %v1142
    %v1144 = vrot.slane %v1137, 4
    %v1145 = vadd.f32 %v1137, %v1144
    %v1146 = vrot.slane %v1145, 2
    %v1147 = vadd.f32 %v1145, %v1146
    %v1148 = vrot.slane %v1147, 1
    %v1149 = vadd.f32 %v1147, %v1148
    %v1150 = vand.u32 2147483647, %v1143
    %v1151 = vand.u32 2147483647, %v1149
    %v1152 = vadd.f32 %v1150, 1e-10
    %v1153 = vadd.f32 %v1151, 1e-10
    %v1154 = vrsqrt.pop %v1152
    %v1155 = vmul.f32 %v1152, %v1154
    %vm1156 = vcmp.eq.f32.partialorder %v1152, inf
    %v1157 = vsel %vm1156, %v1152, %v1155
    %vm1158 = vcmp.eq.f32.partialorder %v1152, 0.0
    %v1159 = vand.u32 %v1152, 2147483648
    %v1160 = vsel %vm1158, %v1159, %v1157
    %v1161 = vrsqrt.pop %v1153
    %v1162 = vmul.f32 %v1153, %v1161
    %vm1163 = vcmp.eq.f32.partialorder %v1153, inf
    %v1164 = vsel %vm1163, %v1153, %v1162
    %vm1165 = vcmp.eq.f32.partialorder %v1153, 0.0
    %v1166 = vand.u32 %v1153, 2147483648
    %v1167 = vsel %vm1165, %v1166, %v1164
    %v1168 = vsel %vm418, %v1160, 0.0
    %v1169 = vsel %vm418, %v1167, 0.0
    %v1170 = vadd.f32 %v1168, %v1169
    %1171 = vadd.xlane.f32.xlu0 %v1170
    %v1172 = vpop.xlane.xlu0 %1171
    %v1173 = vrot.slane %v1172, 4
    %v1174 = vadd.f32 %v1172, %v1173
    %v1175 = vrot.slane %v1174, 2
    %v1176 = vadd.f32 %v1174, %v1175
    %v1177 = vrot.slane %v1176, 1
    %v1178 = vadd.f32 %v1176, %v1177
    %s1179 = vtos %v1178
    %v1180 = vstv %s1179
    %vm1181 = vcmp.ge.f32.partialorder %v1180, 1e-09
    %v1182 = vsel %vm1181, 1, 0
    %v1183 = vcvt.s32.f32 %v1182
    %v1184 = vmul.f32 %v934, %v1183
    %v1185 = vadd.f32 %v952, 1e-10
    %v1186 = vadd.f32 %v953, 1e-10
    %v1187 = vrcp.pop %v1185
    %v1188 = vmul.f32 %v1150, %v1187
    %v1189 = vrcp.pop %v1186
    %v1190 = vmul.f32 %v1151, %v1189
    %vm1191 = vcmp.gt.f32.partialorder %v1184, 0.0
    %v1192 = vsel %vm1191, 1, 0
    %vm1193 = vcmp.eq.s32.totalorder %v1192, 1
    %v1194 = vsel %vm1193, %v1188, 1.0
    %v1195 = vsel %vm1193, %v1190, 1.0
    %v1196 = vmul.f32 %v1184, %v1130
    %v1197 = vmul.f32 %v1184, %v1131
    %v1198 = vmul.f32 %v1194, %v950
    %v1199 = vmul.f32 %v1195, %v951
    %v1200 = vadd.f32 %v1196, %v1198
    %v1201 = vadd.f32 %v1197, %v1199
    %v1202 = vsel %vm1193, %v1150, %v952
    %v1203 = vsel %vm1193, %v1151, %v953
    %v1204 = vmul.f32 %v1200, 0.05
    %v1205 = vmul.f32 %v1201, 0.05
    %1206 = vmatprep.subr.mxu0 0.0
    %1207 = vmatpush1.msra.mxu0 0.0
    %1208 = vmatprep.subr.mxu0 0.0
    %1209 = vmatpush1.msra.mxu0 0.0
    %1210 = vmatprep.subr.mxu0 0.0
    %1211 = vmatpush1.msra.mxu0 0.0
    %1212 = vmatprep.subr.mxu0 0.0
    %1213 = vmatpush1.msra.mxu0 0.0
    %1214 = vmatprep.subr.mxu0 0.0
    %1215 = vmatpush1.msra.mxu0 0.0
    %1216 = vmatprep.subr.mxu0 0.0
    %1217 = vmatpush1.msra.mxu0 0.0
    %1218 = vmatprep.subr.mxu0 0.0
    %1219 = vmatpush1.msra.mxu0 0.0
    %1220 = vmatprep.subr.mxu0 0.0
    %1221 = vmatpush1.msra.mxu0 0.0
    %1222 = vmatprep.subr.mxu0 0.0
    %1223 = vmatpush1.msra.mxu0 0.0
    %1224 = vmatprep.subr.mxu0 0.0
    %1225 = vmatpush1.msra.mxu0 0.0
    %1226 = vmatprep.subr.mxu0 0.0
    %1227 = vmatpush1.msra.mxu0 0.0
    %1228 = vmatprep.subr.mxu0 0.0
    %1229 = vmatpush1.msra.mxu0 0.0
    %1230 = vmatprep.subr.mxu0 0.0
    %1231 = vmatpush1.msra.mxu0 0.0
    %1232 = vmatprep.subr.mxu0 0.0
    %1233 = vmatpush1.msra.mxu0 0.0
    %1234 = vmatprep.subr.mxu0 0.0
    %1235 = vmatpush1.msra.mxu0 0.0
    %1236 = vmatprep.subr.mxu0 0.0
    %1237 = vmatpush1.msra.mxu0 %v1200
    %1238 = vmatprep.subr.mxu0 0.0
    %1239 = vmatpush2.msra.mxu0 0.0
    %1240 = vmatprep.subr.mxu0 0.0
    %1241 = vmatpush2.msra.mxu0 0.0
    %1242 = vmatprep.subr.mxu0 0.0
    %1243 = vmatpush2.msra.mxu0 0.0
    %1244 = vmatprep.subr.mxu0 0.0
    %1245 = vmatpush2.msra.mxu0 0.0
    %1246 = vmatprep.subr.mxu0 0.0
    %1247 = vmatpush2.msra.mxu0 0.0
    %1248 = vmatprep.subr.mxu0 0.0
    %1249 = vmatpush2.msra.mxu0 0.0
    %1250 = vmatprep.subr.mxu0 0.0
    %1251 = vmatpush2.msra.mxu0 0.0
    %1252 = vmatprep.subr.mxu0 0.0
    %1253 = vmatpush2.msra.mxu0 0.0
    %1254 = vmatprep.subr.mxu0 0.0
    %1255 = vmatpush2.msra.mxu0 0.0
    %1256 = vmatprep.subr.mxu0 0.0
    %1257 = vmatpush2.msra.mxu0 0.0
    %1258 = vmatprep.subr.mxu0 0.0
    %1259 = vmatpush2.msra.mxu0 0.0
    %1260 = vmatprep.subr.mxu0 0.0
    %1261 = vmatpush2.msra.mxu0 0.0
    %1262 = vmatprep.subr.mxu0 0.0
    %1263 = vmatpush2.msra.mxu0 0.0
    %1264 = vmatprep.subr.mxu0 0.0
    %1265 = vmatpush2.msra.mxu0 0.0
    %1266 = vmatprep.subr.mxu0 0.0
    %1267 = vmatpush2.msra.mxu0 0.0
    %1268 = vmatprep.subr.mxu0 0.0
    %1269 = vmatpush2.msra.mxu0 0.0
    %1270 = vmatprep.mubr.f32.mxu0 0.0
    %1271 = vmatmul.mubr.f32.gmra.mxu0 %v39
    %v1272 = vpop.f32.mrf.mxu0
    %v1273 = vadd.f32 %v1204, %v1272
    %v1274 = vpop.f32.mrf.mxu0
    %1275 = vdwg.mxu0
    %1276 = vmatprep.subr.mxu0 0.0
    %1277 = vmatpush1.msra.mxu0 0.0
    %1278 = vmatprep.subr.mxu0 0.0
    %1279 = vmatpush1.msra.mxu0 0.0
    %1280 = vmatprep.subr.mxu0 0.0
    %1281 = vmatpush1.msra.mxu0 0.0
    %1282 = vmatprep.subr.mxu0 0.0
    %1283 = vmatpush1.msra.mxu0 0.0
    %1284 = vmatprep.subr.mxu0 0.0
    %1285 = vmatpush1.msra.mxu0 0.0
    %1286 = vmatprep.subr.mxu0 0.0
    %1287 = vmatpush1.msra.mxu0 0.0
    %1288 = vmatprep.subr.mxu0 0.0
    %1289 = vmatpush1.msra.mxu0 0.0
    %1290 = vmatprep.subr.mxu0 0.0
    %1291 = vmatpush1.msra.mxu0 0.0
    %1292 = vmatprep.subr.mxu0 0.0
    %1293 = vmatpush1.msra.mxu0 0.0
    %1294 = vmatprep.subr.mxu0 0.0
    %1295 = vmatpush1.msra.mxu0 0.0
    %1296 = vmatprep.subr.mxu0 0.0
    %1297 = vmatpush1.msra.mxu0 0.0
    %1298 = vmatprep.subr.mxu0 0.0
    %1299 = vmatpush1.msra.mxu0 0.0
    %1300 = vmatprep.subr.mxu0 0.0
    %1301 = vmatpush1.msra.mxu0 0.0
    %1302 = vmatprep.subr.mxu0 0.0
    %1303 = vmatpush1.msra.mxu0 0.0
    %1304 = vmatprep.subr.mxu0 0.0
    %1305 = vmatpush1.msra.mxu0 0.0
    %1306 = vmatprep.subr.mxu0 0.0
    %1307 = vmatpush1.msra.mxu0 %v1201
    %1308 = vmatprep.subr.mxu0 0.0
    %1309 = vmatpush2.msra.mxu0 0.0
    %1310 = vmatprep.subr.mxu0 0.0
    %1311 = vmatpush2.msra.mxu0 0.0
    %1312 = vmatprep.subr.mxu0 0.0
    %1313 = vmatpush2.msra.mxu0 0.0
    %1314 = vmatprep.subr.mxu0 0.0
    %1315 = vmatpush2.msra.mxu0 0.0
    %1316 = vmatprep.subr.mxu0 0.0
    %1317 = vmatpush2.msra.mxu0 0.0
    %1318 = vmatprep.subr.mxu0 0.0
    %1319 = vmatpush2.msra.mxu0 0.0
    %1320 = vmatprep.subr.mxu0 0.0
    %1321 = vmatpush2.msra.mxu0 0.0
    %1322 = vmatprep.subr.mxu0 0.0
    %1323 = vmatpush2.msra.mxu0 0.0
    %1324 = vmatprep.subr.mxu0 0.0
    %1325 = vmatpush2.msra.mxu0 0.0
    %1326 = vmatprep.subr.mxu0 0.0
    %1327 = vmatpush2.msra.mxu0 0.0
    %1328 = vmatprep.subr.mxu0 0.0
    %1329 = vmatpush2.msra.mxu0 0.0
    %1330 = vmatprep.subr.mxu0 0.0
    %1331 = vmatpush2.msra.mxu0 0.0
    %1332 = vmatprep.subr.mxu0 0.0
    %1333 = vmatpush2.msra.mxu0 0.0
    %1334 = vmatprep.subr.mxu0 0.0
    %1335 = vmatpush2.msra.mxu0 0.0
    %1336 = vmatprep.subr.mxu0 0.0
    %1337 = vmatpush2.msra.mxu0 0.0
    %1338 = vmatprep.subr.mxu0 0.0
    %1339 = vmatpush2.msra.mxu0 0.0
    %1340 = vmatprep.mubr.f32.mxu0 0.0
    %1341 = vmatmul.mubr.f32.gmra.mxu0 %v112
    %v1342 = vpop.f32.mrf.mxu0
    %v1343 = vadd.f32 %v1205, %v1342
    %v1344 = vpop.f32.mrf.mxu0
    %1345 = vdwg.mxu0
    %v1346 = vmul.f32 %v1200, %v1273
    %v1347 = vmul.f32 %v1201, %v1343
    %1348 = vadd.xlane.f32.xlu0 %v1346
    %v1349 = vpop.xlane.xlu0 %1348
    %1350 = vadd.xlane.f32.xlu0 %v1347
    %v1351 = vpop.xlane.xlu0 %1350
    %v1352 = vrot.slane %v1349, 4
    %v1353 = vadd.f32 %v1349, %v1352
    %v1354 = vrot.slane %v1353, 2
    %v1355 = vadd.f32 %v1353, %v1354
    %v1356 = vrot.slane %v1355, 1
    %v1357 = vadd.f32 %v1355, %v1356
    %v1358 = vrot.slane %v1351, 4
    %v1359 = vadd.f32 %v1351, %v1358
    %v1360 = vrot.slane %v1359, 2
    %v1361 = vadd.f32 %v1359, %v1360
    %v1362 = vrot.slane %v1361, 1
    %v1363 = vadd.f32 %v1361, %v1362
    %v1364 = vand.u32 2147483647, %v1357
    %v1365 = vand.u32 2147483647, %v1363
    %v1366 = vadd.f32 %v1364, 1e-10
    %v1367 = vadd.f32 %v1365, 1e-10
    %v1368 = vrcp.pop %v1366
    %v1369 = vmul.f32 %v1202, %v1368
    %v1370 = vrcp.pop %v1367
    %v1371 = vmul.f32 %v1203, %v1370
    %v1372 = vmul.f32 %v1369, %v1184
    %v1373 = vmul.f32 %v1371, %v1184
    %v1374 = vmul.f32 %v1372, %v1200
    %v1375 = vmul.f32 %v1373, %v1201
    %v1376 = vadd.f32 %v1126, %v1374
    %v1377 = vadd.f32 %v1127, %v1375
    %v1378 = vmul.f32 %v1372, %v1273
    %v1379 = vmul.f32 %v1373, %v1343
    %v1380 = vsub.f32 %v1130, %v1378
    %v1381 = vsub.f32 %v1131, %v1379
    %v1382 = vmul.f32 %v1380, %v1380
    %v1383 = vmul.f32 %v1381, %v1381
    %1384 = vadd.xlane.f32.xlu0 %v1382
    %v1385 = vpop.xlane.xlu0 %1384
    %1386 = vadd.xlane.f32.xlu0 %v1383
    %v1387 = vpop.xlane.xlu0 %1386
    %v1388 = vrot.slane %v1385, 4
    %v1389 = vadd.f32 %v1385, %v1388
    %v1390 = vrot.slane %v1389, 2
    %v1391 = vadd.f32 %v1389, %v1390
    %v1392 = vrot.slane %v1391, 1
    %v1393 = vadd.f32 %v1391, %v1392
    %v1394 = vrot.slane %v1387, 4
    %v1395 = vadd.f32 %v1387, %v1394
    %v1396 = vrot.slane %v1395, 2
    %v1397 = vadd.f32 %v1395, %v1396
    %v1398 = vrot.slane %v1397, 1
    %v1399 = vadd.f32 %v1397, %v1398
    %v1400 = vand.u32 2147483647, %v1393
    %v1401 = vand.u32 2147483647, %v1399
    %v1402 = vadd.f32 %v1400, 1e-10
    %v1403 = vadd.f32 %v1401, 1e-10
    %v1404 = vrsqrt.pop %v1402
    %v1405 = vmul.f32 %v1402, %v1404
    %vm1406 = vcmp.eq.f32.partialorder %v1402, inf
    %v1407 = vsel %vm1406, %v1402, %v1405
    %vm1408 = vcmp.eq.f32.partialorder %v1402, 0.0
    %v1409 = vand.u32 %v1402, 2147483648
    %v1410 = vsel %vm1408, %v1409, %v1407
    %v1411 = vrsqrt.pop %v1403
    %v1412 = vmul.f32 %v1403, %v1411
    %vm1413 = vcmp.eq.f32.partialorder %v1403, inf
    %v1414 = vsel %vm1413, %v1403, %v1412
    %vm1415 = vcmp.eq.f32.partialorder %v1403, 0.0
    %v1416 = vand.u32 %v1403, 2147483648
    %v1417 = vsel %vm1415, %v1416, %v1414
    %v1418 = vsel %vm418, %v1410, 0.0
    %v1419 = vsel %vm418, %v1417, 0.0
    %v1420 = vadd.f32 %v1418, %v1419
    %1421 = vadd.xlane.f32.xlu0 %v1420
    %v1422 = vpop.xlane.xlu0 %1421
    %v1423 = vrot.slane %v1422, 4
    %v1424 = vadd.f32 %v1422, %v1423
    %v1425 = vrot.slane %v1424, 2
    %v1426 = vadd.f32 %v1424, %v1425
    %v1427 = vrot.slane %v1426, 1
    %v1428 = vadd.f32 %v1426, %v1427
    %s1429 = vtos %v1428
    %v1430 = vstv %s1429
    %vm1431 = vcmp.ge.f32.partialorder %v1430, 1e-09
    %v1432 = vsel %vm1431, 1, 0
    %v1433 = vcvt.s32.f32 %v1432
    %v1434 = vmul.f32 %v1184, %v1433
    %v1435 = vadd.f32 %v1202, 1e-10
    %v1436 = vadd.f32 %v1203, 1e-10
    %v1437 = vrcp.pop %v1435
    %v1438 = vmul.f32 %v1400, %v1437
    %v1439 = vrcp.pop %v1436
    %v1440 = vmul.f32 %v1401, %v1439
    %vm1441 = vcmp.gt.f32.partialorder %v1434, 0.0
    %v1442 = vsel %vm1441, 1, 0
    %vm1443 = vcmp.eq.s32.totalorder %v1442, 1
    %v1444 = vsel %vm1443, %v1438, 1.0
    %v1445 = vsel %vm1443, %v1440, 1.0
    %v1446 = vmul.f32 %v1434, %v1380
    %v1447 = vmul.f32 %v1434, %v1381
    %v1448 = vmul.f32 %v1444, %v1200
    %v1449 = vmul.f32 %v1445, %v1201
    %v1450 = vadd.f32 %v1446, %v1448
    %v1451 = vadd.f32 %v1447, %v1449
    %v1452 = vsel %vm1443, %v1400, %v1202
    %v1453 = vsel %vm1443, %v1401, %v1203
    %v1454 = vmul.f32 %v1450, 0.05
    %v1455 = vmul.f32 %v1451, 0.05
    %1456 = vmatprep.subr.mxu0 0.0
    %1457 = vmatpush1.msra.mxu0 0.0
    %1458 = vmatprep.subr.mxu0 0.0
    %1459 = vmatpush1.msra.mxu0 0.0
    %1460 = vmatprep.subr.mxu0 0.0
    %1461 = vmatpush1.msra.mxu0 0.0
    %1462 = vmatprep.subr.mxu0 0.0
    %1463 = vmatpush1.msra.mxu0 0.0
    %1464 = vmatprep.subr.mxu0 0.0
    %1465 = vmatpush1.msra.mxu0 0.0
    %1466 = vmatprep.subr.mxu0 0.0
    %1467 = vmatpush1.msra.mxu0 0.0
    %1468 = vmatprep.subr.mxu0 0.0
    %1469 = vmatpush1.msra.mxu0 0.0
    %1470 = vmatprep.subr.mxu0 0.0
    %1471 = vmatpush1.msra.mxu0 0.0
    %1472 = vmatprep.subr.mxu0 0.0
    %1473 = vmatpush1.msra.mxu0 0.0
    %1474 = vmatprep.subr.mxu0 0.0
    %1475 = vmatpush1.msra.mxu0 0.0
    %1476 = vmatprep.subr.mxu0 0.0
    %1477 = vmatpush1.msra.mxu0 0.0
    %1478 = vmatprep.subr.mxu0 0.0
    %1479 = vmatpush1.msra.mxu0 0.0
    %1480 = vmatprep.subr.mxu0 0.0
    %1481 = vmatpush1.msra.mxu0 0.0
    %1482 = vmatprep.subr.mxu0 0.0
    %1483 = vmatpush1.msra.mxu0 0.0
    %1484 = vmatprep.subr.mxu0 0.0
    %1485 = vmatpush1.msra.mxu0 0.0
    %1486 = vmatprep.subr.mxu0 0.0
    %1487 = vmatpush1.msra.mxu0 %v1450
    %1488 = vmatprep.subr.mxu0 0.0
    %1489 = vmatpush2.msra.mxu0 0.0
    %1490 = vmatprep.subr.mxu0 0.0
    %1491 = vmatpush2.msra.mxu0 0.0
    %1492 = vmatprep.subr.mxu0 0.0
    %1493 = vmatpush2.msra.mxu0 0.0
    %1494 = vmatprep.subr.mxu0 0.0
    %1495 = vmatpush2.msra.mxu0 0.0
    %1496 = vmatprep.subr.mxu0 0.0
    %1497 = vmatpush2.msra.mxu0 0.0
    %1498 = vmatprep.subr.mxu0 0.0
    %1499 = vmatpush2.msra.mxu0 0.0
    %1500 = vmatprep.subr.mxu0 0.0
    %1501 = vmatpush2.msra.mxu0 0.0
    %1502 = vmatprep.subr.mxu0 0.0
    %1503 = vmatpush2.msra.mxu0 0.0
    %1504 = vmatprep.subr.mxu0 0.0
    %1505 = vmatpush2.msra.mxu0 0.0
    %1506 = vmatprep.subr.mxu0 0.0
    %1507 = vmatpush2.msra.mxu0 0.0
    %1508 = vmatprep.subr.mxu0 0.0
    %1509 = vmatpush2.msra.mxu0 0.0
    %1510 = vmatprep.subr.mxu0 0.0
    %1511 = vmatpush2.msra.mxu0 0.0
    %1512 = vmatprep.subr.mxu0 0.0
    %1513 = vmatpush2.msra.mxu0 0.0
    %1514 = vmatprep.subr.mxu0 0.0
    %1515 = vmatpush2.msra.mxu0 0.0
    %1516 = vmatprep.subr.mxu0 0.0
    %1517 = vmatpush2.msra.mxu0 0.0
    %1518 = vmatprep.subr.mxu0 0.0
    %1519 = vmatpush2.msra.mxu0 0.0
    %1520 = vmatprep.mubr.f32.mxu0 0.0
    %1521 = vmatmul.mubr.f32.gmra.mxu0 %v39
    %v1522 = vpop.f32.mrf.mxu0
    %v1523 = vadd.f32 %v1454, %v1522
    %v1524 = vpop.f32.mrf.mxu0
    %1525 = vdwg.mxu0
    %1526 = vmatprep.subr.mxu0 0.0
    %1527 = vmatpush1.msra.mxu0 0.0
    %1528 = vmatprep.subr.mxu0 0.0
    %1529 = vmatpush1.msra.mxu0 0.0
    %1530 = vmatprep.subr.mxu0 0.0
    %1531 = vmatpush1.msra.mxu0 0.0
    %1532 = vmatprep.subr.mxu0 0.0
    %1533 = vmatpush1.msra.mxu0 0.0
    %1534 = vmatprep.subr.mxu0 0.0
    %1535 = vmatpush1.msra.mxu0 0.0
    %1536 = vmatprep.subr.mxu0 0.0
    %1537 = vmatpush1.msra.mxu0 0.0
    %1538 = vmatprep.subr.mxu0 0.0
    %1539 = vmatpush1.msra.mxu0 0.0
    %1540 = vmatprep.subr.mxu0 0.0
    %1541 = vmatpush1.msra.mxu0 0.0
    %1542 = vmatprep.subr.mxu0 0.0
    %1543 = vmatpush1.msra.mxu0 0.0
    %1544 = vmatprep.subr.mxu0 0.0
    %1545 = vmatpush1.msra.mxu0 0.0
    %1546 = vmatprep.subr.mxu0 0.0
    %1547 = vmatpush1.msra.mxu0 0.0
    %1548 = vmatprep.subr.mxu0 0.0
    %1549 = vmatpush1.msra.mxu0 0.0
    %1550 = vmatprep.subr.mxu0 0.0
    %1551 = vmatpush1.msra.mxu0 0.0
    %1552 = vmatprep.subr.mxu0 0.0
    %1553 = vmatpush1.msra.mxu0 0.0
    %1554 = vmatprep.subr.mxu0 0.0
    %1555 = vmatpush1.msra.mxu0 0.0
    %1556 = vmatprep.subr.mxu0 0.0
    %1557 = vmatpush1.msra.mxu0 %v1451
    %1558 = vmatprep.subr.mxu0 0.0
    %1559 = vmatpush2.msra.mxu0 0.0
    %1560 = vmatprep.subr.mxu0 0.0
    %1561 = vmatpush2.msra.mxu0 0.0
    %1562 = vmatprep.subr.mxu0 0.0
    %1563 = vmatpush2.msra.mxu0 0.0
    %1564 = vmatprep.subr.mxu0 0.0
    %1565 = vmatpush2.msra.mxu0 0.0
    %1566 = vmatprep.subr.mxu0 0.0
    %1567 = vmatpush2.msra.mxu0 0.0
    %1568 = vmatprep.subr.mxu0 0.0
    %1569 = vmatpush2.msra.mxu0 0.0
    %1570 = vmatprep.subr.mxu0 0.0
    %1571 = vmatpush2.msra.mxu0 0.0
    %1572 = vmatprep.subr.mxu0 0.0
    %1573 = vmatpush2.msra.mxu0 0.0
    %1574 = vmatprep.subr.mxu0 0.0
    %1575 = vmatpush2.msra.mxu0 0.0
    %1576 = vmatprep.subr.mxu0 0.0
    %1577 = vmatpush2.msra.mxu0 0.0
    %1578 = vmatprep.subr.mxu0 0.0
    %1579 = vmatpush2.msra.mxu0 0.0
    %1580 = vmatprep.subr.mxu0 0.0
    %1581 = vmatpush2.msra.mxu0 0.0
    %1582 = vmatprep.subr.mxu0 0.0
    %1583 = vmatpush2.msra.mxu0 0.0
    %1584 = vmatprep.subr.mxu0 0.0
    %1585 = vmatpush2.msra.mxu0 0.0
    %1586 = vmatprep.subr.mxu0 0.0
    %1587 = vmatpush2.msra.mxu0 0.0
    %1588 = vmatprep.subr.mxu0 0.0
    %1589 = vmatpush2.msra.mxu0 0.0
    %1590 = vmatprep.mubr.f32.mxu0 0.0
    %1591 = vmatmul.mubr.f32.gmra.mxu0 %v112
    %v1592 = vpop.f32.mrf.mxu0
    %v1593 = vadd.f32 %v1455, %v1592
    %v1594 = vpop.f32.mrf.mxu0
    %1595 = vdwg.mxu0
    %v1596 = vmul.f32 %v1450, %v1523
    %v1597 = vmul.f32 %v1451, %v1593
    %1598 = vadd.xlane.f32.xlu0 %v1596
    %v1599 = vpop.xlane.xlu0 %1598
    %1600 = vadd.xlane.f32.xlu0 %v1597
    %v1601 = vpop.xlane.xlu0 %1600
    %v1602 = vrot.slane %v1599, 4
    %v1603 = vadd.f32 %v1599, %v1602
    %v1604 = vrot.slane %v1603, 2
    %v1605 = vadd.f32 %v1603, %v1604
    %v1606 = vrot.slane %v1605, 1
    %v1607 = vadd.f32 %v1605, %v1606
    %v1608 = vrot.slane %v1601, 4
    %v1609 = vadd.f32 %v1601, %v1608
    %v1610 = vrot.slane %v1609, 2
    %v1611 = vadd.f32 %v1609, %v1610
    %v1612 = vrot.slane %v1611, 1
    %v1613 = vadd.f32 %v1611, %v1612
    %v1614 = vand.u32 2147483647, %v1607
    %v1615 = vand.u32 2147483647, %v1613
    %v1616 = vadd.f32 %v1614, 1e-10
    %v1617 = vadd.f32 %v1615, 1e-10
    %v1618 = vrcp.pop %v1616
    %v1619 = vmul.f32 %v1452, %v1618
    %v1620 = vrcp.pop %v1617
    %v1621 = vmul.f32 %v1453, %v1620
    %v1622 = vmul.f32 %v1619, %v1434
    %v1623 = vmul.f32 %v1621, %v1434
    %v1624 = vmul.f32 %v1622, %v1450
    %v1625 = vmul.f32 %v1623, %v1451
    %v1626 = vadd.f32 %v1376, %v1624
    %v1627 = vadd.f32 %v1377, %v1625
    %1628 = vst [vmem:[#allocation5] sm:$0xff] %v1626
    %1629 = vst [vmem:[#allocation5 + $0x8] sm:$0xff] %v1627
    // Predicated region
    $region18: #{tpu_custom_call.1} parent=1 // pred_check
      _
    $region19: #{tpu_custom_call.1} parent=1 // pred_check_branch
      %1631 = sbr.rel (0) target = $region21
    $region20: #{tpu_custom_call.1} parent=1 // pred_region
      %s1633 = ssub.s32 256, 256
      %1634 = vsyncadd [#allocation4], %s1633
      %s1635 = sshll.u32 [#allocation5], 4
      %s1636 = int_to_ptr.vmem [resolvable:$true] %s1635
      %1641 = dma.vmem_to_hbm [thread:$0]  %s1636, 256, %s3, [#allocation4], 128, 128, 8
    $region21: #{tpu_custom_call.1} parent=1 // pred_fallthru
      _
    // Predicated region
    $region22: #{tpu_custom_call.1} parent=1 // pred_check
      _
    $region23: #{tpu_custom_call.1} parent=1 // pred_check_branch
      %1643 = sbr.rel (0) target = $region25
    $region24: #{tpu_custom_call.1} parent=1 // pred_region
      %1644 = dma.done [#allocation4], 256
    $region25: #{tpu_custom_call.1} parent=1 // pred_fallthru
      _
    %1645 = vsyncpa [#allocation3], 1
    %1646 = vsyncpa [#allocation4], 1

</llo_original>
